<compile_context>
chip_gen: v5e
topology: v5e:2x2
jax: 0.10.0
libtpu: 0.0.40
codegen_flags: <defaults>
</compile_context>

<pallas_src>
import functools

import jax
import jax.numpy as jnp
from jax.experimental import pallas as pl
from jax.experimental.pallas import tpu as pltpu


def _round_up(x, m):
    return ((x + m - 1) // m) * m


def _disc_kernel(x_ref, lab_ref, w1i_ref, w1c_ref, b1_ref, w2_ref, b2_ref,
                 o_ref):
    """One batch tile of the discriminator MLP.

    x_ref   : [TB, image_dim]  f32          (VMEM, pipelined over the batch grid)
    lab_ref : [TB, 1]          int32        (VMEM)
    w1i_ref : [image_dim, H]   bf16 or f32  (VMEM, resident: constant index_map)
    w1c_ref : [C_pad, H]       bf16 or f32  (VMEM, resident)
    b1_ref  : [1, H]           f32          (VMEM, resident)
    w2_ref  : [1, H]           f32          (VMEM, resident)
    b2_ref  : [1, 1]           f32          (SMEM scalar)
    o_ref   : [TB, 1]          f32
    """
    tb = x_ref.shape[0]
    c_pad = w1c_ref.shape[0]
    mxu_dtype = w1i_ref.dtype  # weights are pre-cast; only x is cast per tile

    # ---- fused one-hot: built in VMEM, never touches HBM -------------------
    cls_iota = jax.lax.broadcasted_iota(jnp.int32, (tb, c_pad), 1)
    onehot = (cls_iota == lab_ref[...]).astype(mxu_dtype)            # [TB, C_pad]

    # ---- layer 1 on the MXU: x @ W1_img + onehot @ W1_cls + b1 --------------
    # (mathematically identical to concat([x, onehot]) @ W1)
    # MXU operands in the stored weight dtype (bf16 default), f32 accumulation.
    h = jnp.dot(x_ref[...].astype(mxu_dtype), w1i_ref[...],
                preferred_element_type=jnp.float32)
    h = h + jnp.dot(onehot, w1c_ref[...],
                    preferred_element_type=jnp.float32)
    h = jnp.maximum(h + b1_ref[...], 0.0)                            # ReLU (f32)

    # ---- layer 2 (out_features == 1): VPU multiply + lane reduction ---------
    # Avoids an N=1 matvec that would waste the MXU; everything stays f32.
    z = jnp.sum(h * w2_ref[...], axis=-1, keepdims=True) + b2_ref[0, 0]
    o_ref[...] = jax.nn.sigmoid(z).astype(o_ref.dtype)               # Sigmoid


@functools.partial(jax.jit, static_argnames=("tile_b",))
def discriminator_forward(x, labels, params, *, tile_b=2048):
    """x: [B, image_dim] f32, labels: [B] int -> [B, 1] f32.

    Weight dtype (bf16 vs f32 MXU operands) is decided in pack_params.
    The f32 path is a correctness-testing path only: f32 MXU throughput is
    several x lower on all generations and doubles weight-feed pressure.
    """
    w1_img, w1_cls, b1, w2_row, b2 = params
    B, image_dim = x.shape
    hidden = w1_img.shape[1]
    c_pad = w1_cls.shape[0]

    # Batch tile: multiple of 8 sublanes.  Aim for >=~8 grid steps (>=4 per
    # v7x TensorCore) so double-buffering has something to prefetch, but grow
    # towards tile_b for large batches (a 2048x64 f32 tile is ~1 MiB
    # double-buffered, far under the 32 MiB scoped VMEM default).
    tile_b = _round_up(max(tile_b, 8), 8)
    tb = min(tile_b,
             _round_up(B, 8),
             max(128, _round_up(pl.cdiv(B, 8), 8)))

    grid = (pl.cdiv(B, tb),)  # ragged tail handled by Pallas partial blocks

    out = pl.pallas_call(
        _disc_kernel,
        out_shape=jax.ShapeDtypeStruct((B, 1), jnp.float32),
        grid_spec=pl.GridSpec(
            grid=grid,
            in_specs=[
                pl.BlockSpec((tb, image_dim), lambda i: (i, 0)),     # x tile
                pl.BlockSpec((tb, 1), lambda i: (i, 0)),             # labels tile
                pl.BlockSpec((image_dim, hidden), lambda i: (0, 0)), # W1_img (resident)
                pl.BlockSpec((c_pad, hidden), lambda i: (0, 0)),     # W1_cls (resident)
                pl.BlockSpec((1, hidden), lambda i: (0, 0)),         # b1
                pl.BlockSpec((1, hidden), lambda i: (0, 0)),         # w2 row
                pl.BlockSpec(memory_space=pltpu.MemorySpace.SMEM),   # b2 scalar
            ],
            out_specs=pl.BlockSpec((tb, 1), lambda i: (i, 0)),
        ),
        compiler_params=pltpu.CompilerParams(
            dimension_semantics=("parallel",)),  # batch tiles independent -> v7x 2 TCs
    )(x, labels.astype(jnp.int32).reshape(B, 1), w1_img, w1_cls, b1, w2_row, b2)
    return out


def init_params(key, image_dim, n_classes, hidden_size):
    """nn.Linear-style init; weights stored as [in, out] so kernel does x @ W."""
    d_in = image_dim + n_classes
    k1, k2, k3, k4 = jax.random.split(key, 4)
    s1 = 1.0 / jnp.sqrt(d_in)
    s2 = 1.0 / jnp.sqrt(hidden_size)
    w1 = jax.random.uniform(k1, (d_in, hidden_size), jnp.float32, -s1, s1)
    b1 = jax.random.uniform(k2, (1, hidden_size), jnp.float32, -s1, s1)
    w2 = jax.random.uniform(k3, (hidden_size, 1), jnp.float32, -s2, s2)
    b2 = jax.random.uniform(k4, (1, 1), jnp.float32, -s2, s2)
    return w1, b1, w2, b2


def pack_params(w1, b1, w2, b2, image_dim, n_classes, mxu_dtype=jnp.bfloat16):
    """Split W1 into image/class parts (one-hot fusion), pad classes to 8, and
    pre-cast the MXU operands (bf16 default; f32 only for validation runs)."""
    hidden = w1.shape[1]
    c_pad = _round_up(max(n_classes, 8), 8)
    w1_img = w1[:image_dim].astype(mxu_dtype)                        # [image_dim, H]
    w1_cls = jnp.zeros((c_pad, hidden), mxu_dtype)
    w1_cls = w1_cls.at[:n_classes].set(
        w1[image_dim:image_dim + n_classes].astype(mxu_dtype))
    w2_row = w2.reshape(1, hidden).astype(jnp.float32)               # [1, H] (VPU, f32)
    return w1_img, w1_cls, b1.astype(jnp.float32), w2_row, b2.astype(jnp.float32)


if __name__ == "__main__":
    # Small but representative shapes: several batch tiles plus a ragged tail
    # (exercises partial-block masking), hidden=256 (module default, lane-aligned).
    batch = 300
    image_dim = 64
    n_classes = 10
    hidden_size = 256

    key = jax.random.PRNGKey(0)
    kx, kl, kp = jax.random.split(key, 3)

    x = jax.random.normal(kx, (batch, image_dim), dtype=jnp.float32)
    labels = jax.random.randint(kl, (batch,), 0, n_classes, dtype=jnp.int32)

    w1, b1, w2, b2 = init_params(kp, image_dim, n_classes, hidden_size)

    # Reference (plain JAX fp32): exactly the PyTorch forward.
    one_hot = jax.nn.one_hot(labels, n_classes, dtype=jnp.float32)
    xin = jnp.concatenate([x, one_hot], axis=1)
    ref = jax.nn.sigmoid(jnp.maximum(xin @ w1 + b1, 0.0) @ w2 + b2)

    # 1) semantics check: f32 MXU operands (validation-only path).
    params_f32 = pack_params(w1, b1, w2, b2, image_dim, n_classes,
                             mxu_dtype=jnp.float32)
    out_f32 = discriminator_forward(x, labels, params_f32, tile_b=128)
    out_f32 = jax.block_until_ready(out_f32)
    assert out_f32.shape == (batch, 1)
    assert jnp.allclose(out_f32, ref, atol=1e-3, rtol=1e-3)

    # 2) performance default: bf16 MXU operands, f32 accumulate / elementwise.
    params_bf16 = pack_params(w1, b1, w2, b2, image_dim, n_classes)
    out_bf16 = discriminator_forward(x, labels, params_bf16)
    out_bf16 = jax.block_until_ready(out_bf16)
    assert out_bf16.shape == (batch, 1)
    assert jnp.allclose(out_bf16, ref, atol=2e-2)

    print("KERNEL_OK")
</pallas_src>

<mosaic_0001>
module attributes {stable_mosaic.version = 11 : i64} {
  func.func @_disc_kernel(%arg0: i32, %arg1: memref<128x64xf32, #tpu.memory_space<vmem>>, %arg2: memref<128x1xi32, #tpu.memory_space<vmem>>, %arg3: memref<64x256xf32, #tpu.memory_space<vmem>>, %arg4: memref<16x256xf32, #tpu.memory_space<vmem>>, %arg5: memref<1x256xf32, #tpu.memory_space<vmem>>, %arg6: memref<1x256xf32, #tpu.memory_space<vmem>>, %arg7: memref<1x1xf32, #tpu.memory_space<smem>>, %arg8: memref<128x1xf32, #tpu.memory_space<vmem>>) attributes {dimension_semantics = [#tpu.dimension_semantics<parallel>], iteration_bounds = array<i64: 3>, scalar_prefetch = 0 : i64, scratch_operands = 0 : i64, tpu.core_type = #tpu.core_type<tc>, window_params = [{transform_indices = @transform_0, window_bounds = array<i64: 128, 64>}, {transform_indices = @transform_1, window_bounds = array<i64: 128, 1>}, {pipeline_mode = #tpu.pipeline_mode<synchronous>, transform_indices = @transform_2, window_bounds = array<i64: 64, 256>}, {pipeline_mode = #tpu.pipeline_mode<synchronous>, transform_indices = @transform_3, window_bounds = array<i64: 16, 256>}, {pipeline_mode = #tpu.pipeline_mode<synchronous>, transform_indices = @transform_4, window_bounds = array<i64: 1, 256>}, {pipeline_mode = #tpu.pipeline_mode<synchronous>, transform_indices = @transform_5, window_bounds = array<i64: 1, 256>}, {transform_indices = @transform_6, window_bounds = array<i64: 1, 1>}, {transform_indices = @transform_7, window_bounds = array<i64: 128, 1>}]} {
    %0 = tpu.iota {dimensions = array<i32: 1>} : vector<128x16xi32>
    %c0 = arith.constant 0 : index
    %c0_0 = arith.constant 0 : index
    %1 = vector.load %arg2[%c0, %c0_0] : memref<128x1xi32, #tpu.memory_space<vmem>>, vector<128x1xi32>
    %2 = vector.broadcast %1 : vector<128x1xi32> to vector<128x16xi32>
    %3 = arith.cmpi eq, %0, %2 : vector<128x16xi32>
    %4 = arith.extui %3 : vector<128x16xi1> to vector<128x16xi32>
    %5 = arith.sitofp %4 : vector<128x16xi32> to vector<128x16xf32>
    %c0_1 = arith.constant 0 : index
    %c0_2 = arith.constant 0 : index
    %6 = vector.load %arg1[%c0_1, %c0_2] : memref<128x64xf32, #tpu.memory_space<vmem>>, vector<128x64xf32>
    %c0_3 = arith.constant 0 : index
    %c0_4 = arith.constant 0 : index
    %7 = vector.load %arg3[%c0_3, %c0_4] : memref<64x256xf32, #tpu.memory_space<vmem>>, vector<64x256xf32>
    %cst = arith.constant dense<0.000000e+00> : vector<128x256xf32>
    %8 = tpu.matmul %6, %7, %cst {dimension_numbers = #tpu.dot_dimension_numbers<[1], [0], [0], [1], [0, 0, 1, 1], [], []>} : vector<128x64xf32>, vector<64x256xf32>, vector<128x256xf32> -> vector<128x256xf32>
    %c0_5 = arith.constant 0 : index
    %c0_6 = arith.constant 0 : index
    %9 = vector.load %arg4[%c0_5, %c0_6] : memref<16x256xf32, #tpu.memory_space<vmem>>, vector<16x256xf32>
    %cst_7 = arith.constant dense<0.000000e+00> : vector<128x256xf32>
    %10 = tpu.matmul %5, %9, %cst_7 {dimension_numbers = #tpu.dot_dimension_numbers<[1], [0], [0], [1], [0, 0, 1, 1], [], []>} : vector<128x16xf32>, vector<16x256xf32>, vector<128x256xf32> -> vector<128x256xf32>
    %11 = arith.addf %8, %10 : vector<128x256xf32>
    %c0_8 = arith.constant 0 : index
    %c0_9 = arith.constant 0 : index
    %12 = vector.load %arg5[%c0_8, %c0_9] : memref<1x256xf32, #tpu.memory_space<vmem>>, vector<1x256xf32>
    %13 = vector.broadcast %12 : vector<1x256xf32> to vector<128x256xf32>
    %14 = arith.addf %11, %13 : vector<128x256xf32>
    %cst_10 = arith.constant 0.000000e+00 : f32
    %15 = vector.broadcast %cst_10 : f32 to vector<128x256xf32>
    %16 = arith.maximumf %14, %15 : vector<128x256xf32>
    %c0_11 = arith.constant 0 : index
    %c0_12 = arith.constant 0 : index
    %17 = vector.load %arg6[%c0_11, %c0_12] : memref<1x256xf32, #tpu.memory_space<vmem>>, vector<1x256xf32>
    %18 = vector.broadcast %17 : vector<1x256xf32> to vector<128x256xf32>
    %19 = arith.mulf %16, %18 : vector<128x256xf32>
    %cst_13 = arith.constant dense<0.000000e+00> : vector<128xf32>
    %20 = vector.multi_reduction <add>, %19, %cst_13 [1] : vector<128x256xf32> to vector<128xf32>
    %21 = vector.shape_cast %20 : vector<128xf32> to vector<128x1xf32>
    %c0_14 = arith.constant 0 : index
    %c0_15 = arith.constant 0 : index
    %22 = memref.load %arg7[%c0_14, %c0_15] : memref<1x1xf32, #tpu.memory_space<smem>>
    %23 = vector.broadcast %22 : f32 to vector<128x1xf32>
    %24 = arith.addf %21, %23 : vector<128x1xf32>
    %25 = arith.negf %24 : vector<128x1xf32>
    %26 = math.exp %25 : vector<128x1xf32>
    %cst_16 = arith.constant 1.000000e+00 : f32
    %27 = vector.broadcast %cst_16 : f32 to vector<128x1xf32>
    %28 = arith.addf %27, %26 : vector<128x1xf32>
    %29 = arith.divf %27, %28 : vector<128x1xf32>
    %c0_17 = arith.constant 0 : index
    %c0_18 = arith.constant 0 : index
    %30 = vector.load %arg8[%c0_17, %c0_18] : memref<128x1xf32, #tpu.memory_space<vmem>>, vector<128x1xf32>
    tpu.vector_store %arg8[%c0_17, %c0_18], %29 {strides = array<i32>} : memref<128x1xf32, #tpu.memory_space<vmem>>, vector<128x1xf32>,
    return
  }
  func.func @transform_0(%arg0: i32) -> (i32, i32) {
    %c0_i32 = arith.constant 0 : i32
    %c0_i32_0 = arith.constant 0 : i32
    return %arg0, %c0_i32 : i32, i32
  }
  func.func @transform_1(%arg0: i32) -> (i32, i32) {
    %c0_i32 = arith.constant 0 : i32
    %c0_i32_0 = arith.constant 0 : i32
    return %arg0, %c0_i32 : i32, i32
  }
  func.func @transform_2(%arg0: i32) -> (i32, i32) {
    %c0_i32 = arith.constant 0 : i32
    %c0_i32_0 = arith.constant 0 : i32
    %c0_i32_1 = arith.constant 0 : i32
    return %c0_i32, %c0_i32_0 : i32, i32
  }
  func.func @transform_3(%arg0: i32) -> (i32, i32) {
    %c0_i32 = arith.constant 0 : i32
    %c0_i32_0 = arith.constant 0 : i32
    %c0_i32_1 = arith.constant 0 : i32
    return %c0_i32, %c0_i32_0 : i32, i32
  }
  func.func @transform_4(%arg0: i32) -> (i32, i32) {
    %c0_i32 = arith.constant 0 : i32
    %c0_i32_0 = arith.constant 0 : i32
    %c0_i32_1 = arith.constant 0 : i32
    return %c0_i32, %c0_i32_0 : i32, i32
  }
  func.func @transform_5(%arg0: i32) -> (i32, i32) {
    %c0_i32 = arith.constant 0 : i32
    %c0_i32_0 = arith.constant 0 : i32
    %c0_i32_1 = arith.constant 0 : i32
    return %c0_i32, %c0_i32_0 : i32, i32
  }
  func.func @transform_6(%arg0: i32) -> (i32, i32) {
    %c0_i32 = arith.constant 0 : i32
    %c0_i32_0 = arith.constant 0 : i32
    %c0_i32_1 = arith.constant 0 : i32
    return %c0_i32, %c0_i32_0 : i32, i32
  }
  func.func @transform_7(%arg0: i32) -> (i32, i32) {
    %c0_i32 = arith.constant 0 : i32
    %c0_i32_0 = arith.constant 0 : i32
    return %arg0, %c0_i32 : i32, i32
  }
}

</mosaic_0001>

<llo_original>
// kernel: discriminator_forward.1
$region0: #{discriminator_forward.1}
  #allocation0 [shape = 'u32[]', space=smem, size = 0x4, offset = 0x4, fixed_abs, tag = 'smem constant byte address 0x4 - core index']
  #allocation1 [shape = 'u32[72,128]{1,0:T(1,128)}', space=vmem, size = 0x9000, scoped, tag = 'internal scratch']
  #allocation2 [shape = 'f32[1,1]{1,0:T(1,128)S(6)}', space=smem, size = 0x200, scoped, tag = 'scoped memory for discriminator_forward.1']
  %s0 = inlined_call_operand.vmem [shape: f32[300,64], index: 0, kind: input, shape index: {}]
  %s1 = inlined_call_operand.vmem [shape: s32[300,1], index: 1, kind: input, shape index: {}]
  %s2 = inlined_call_operand.vmem [shape: f32[64,256], index: 2, kind: input, shape index: {}]
  %s3 = inlined_call_operand.vmem [shape: f32[16,256], index: 3, kind: input, shape index: {}]
  %s4 = inlined_call_operand.vmem [shape: f32[1,256], index: 4, kind: input, shape index: {}]
  %s5 = inlined_call_operand.vmem [shape: f32[1,256], index: 5, kind: input, shape index: {}]
  %s6 = inlined_call_operand.<no memory space> [shape: f32[1,1], index: 6, kind: input, shape index: {}]
  %s7 = inlined_call_operand.vmem [shape: f32[300,1], index: 7, kind: output, shape index: {}]
  %s8 = sld [smem:[#allocation0]]
  $region109: #{discriminator_forward.1} parent=0
    _
  %s10 = ssub.s32 1, %s8
  %s11 = scalar_select 0, %s10, %s8
  %12 = sst [smem:[#allocation2]] %s6
  $region1: #{discriminator_forward.1} parent=0
    #allocation3 [shape = 'u8[131072]{0}', space=vmem, size = 0x20000, scoped, tag = 'output window, operand 0']
    loop: start=0, step=1, limit=5
    $region2: #{discriminator_forward.1} parent=1 // loop_pre_header
      _
    $region3: #{discriminator_forward.1} parent=1 // loop_header
      %s14 = sphi 0, %s18
      %p15 = scmp.ge.s32.totalorder %s14, 5
      %s24 = sphi 0, %s26
      %s27 = sphi 0, %s24
      %s28 = sphi 0, %s27
      %s44 = sphi 0, %s28
      %s50 = sphi 0, %s52
      %s53 = sphi 0, %s50
      %s54 = sphi 0, %s53
      %s70 = sphi 0, %s54
      %s74 = sphi 0, %s74
      %s76 = sphi 0, %s74
      %s77 = sphi 0, %s76
      %s91 = sphi 0, %s77
      %s95 = sphi 0, %s95
      %s97 = sphi 0, %s95
      %s98 = sphi 0, %s97
      %s112 = sphi 0, %s98
      %s116 = sphi 0, %s116
      %s118 = sphi 0, %s116
      %s119 = sphi 0, %s118
      %s133 = sphi 0, %s119
      %s137 = sphi 0, %s137
      %s139 = sphi 0, %s137
      %s140 = sphi 0, %s139
      %s154 = sphi 0, %s140
      %s158 = sphi 0, %s158
      %s160 = sphi 0, %s158
      %s161 = sphi 0, %s160
      %s175 = sphi 0, %s161
      %s181 = sphi 0, %s183
      %s184 = sphi 0, %s181
      %s185 = sphi 0, %s184
      %s201 = sphi 0, %s185
    $region4: #{discriminator_forward.1} parent=1 // loop_header_branch
      %17 = sbr.rel (%p15) target = $region8
    $region5: #{discriminator_forward.1} parent=1 // loop_body
      %s19 = ssub.s32 %s14, 1
      %s20 = ssub.s32 %s14, 2
      %s21 = sadd.s32 %s14, 1
      %s22 = ssub.s32 %s14, %s21
      %p23 = scmp.eq.s32.totalorder %s22, 0
      %s25 = sadd.s32 %s24, 1
      %s26 = scalar_select %p23, %s24, %s25
      %p29 = pneg %p23
      %p30 = scmp.eq.s32.totalorder %s14, 2
      %p31 = por %p29, %p30
      %p32 = scmp.ne.s32.totalorder %s24, %s27
      %p33 = scmp.eq.s32.totalorder %s14, 0
      %p34 = por %p32, %p33
      %p35 = scmp.ne.s32.totalorder %s24, %s27
      %p36 = scmp.eq.s32.totalorder %s19, 2
      %p37 = por %p35, %p36
      %p38 = scmp.ne.s32.totalorder %s27, %s28
      %p39 = scmp.eq.s32.totalorder %s19, 0
      %p40 = por %p38, %p39
      %p41 = scmp.ne.s32.totalorder %s27, %s28
      %p42 = scmp.eq.s32.totalorder %s20, 2
      %p43 = por %p41, %p42
      %p45 = scmp.ne.s32.totalorder %s28, %s44
      %p46 = scmp.eq.s32.totalorder %s20, 0
      %p47 = por %p45, %p46
      %s48 = ssub.s32 %s14, %s21
      %p49 = scmp.eq.s32.totalorder %s48, 0
      %s51 = sadd.s32 %s50, 1
      %s52 = scalar_select %p49, %s50, %s51
      %p55 = pneg %p49
      %p56 = scmp.eq.s32.totalorder %s14, 2
      %p57 = por %p55, %p56
      %p58 = scmp.ne.s32.totalorder %s50, %s53
      %p59 = scmp.eq.s32.totalorder %s14, 0
      %p60 = por %p58, %p59
      %p61 = scmp.ne.s32.totalorder %s50, %s53
      %p62 = scmp.eq.s32.totalorder %s19, 2
      %p63 = por %p61, %p62
      %p64 = scmp.ne.s32.totalorder %s53, %s54
      %p65 = scmp.eq.s32.totalorder %s19, 0
      %p66 = por %p64, %p65
      %p67 = scmp.ne.s32.totalorder %s53, %s54
      %p68 = scmp.eq.s32.totalorder %s20, 2
      %p69 = por %p67, %p68
      %p71 = scmp.ne.s32.totalorder %s54, %s70
      %p72 = scmp.eq.s32.totalorder %s20, 0
      %p73 = por %p71, %p72
      %s75 = sadd.s32 %s74, 1
      %p78 = scmp.eq.s32.totalorder %s14, 2
      %p79 = scmp.ne.s32.totalorder %s74, %s76
      %p80 = scmp.eq.s32.totalorder %s14, 0
      %p81 = por %p79, %p80
      %p82 = scmp.ne.s32.totalorder %s74, %s76
      %p83 = scmp.eq.s32.totalorder %s19, 2
      %p84 = por %p82, %p83
      %p85 = scmp.ne.s32.totalorder %s76, %s77
      %p86 = scmp.eq.s32.totalorder %s19, 0
      %p87 = por %p85, %p86
      %p88 = scmp.ne.s32.totalorder %s76, %s77
      %p89 = scmp.eq.s32.totalorder %s20, 2
      %p90 = por %p88, %p89
      %p92 = scmp.ne.s32.totalorder %s77, %s91
      %p93 = scmp.eq.s32.totalorder %s20, 0
      %p94 = por %p92, %p93
      %s96 = sadd.s32 %s95, 1
      %p99 = scmp.eq.s32.totalorder %s14, 2
      %p100 = scmp.ne.s32.totalorder %s95, %s97
      %p101 = scmp.eq.s32.totalorder %s14, 0
      %p102 = por %p100, %p101
      %p103 = scmp.ne.s32.totalorder %s95, %s97
      %p104 = scmp.eq.s32.totalorder %s19, 2
      %p105 = por %p103, %p104
      %p106 = scmp.ne.s32.totalorder %s97, %s98
      %p107 = scmp.eq.s32.totalorder %s19, 0
      %p108 = por %p106, %p107
      %p109 = scmp.ne.s32.totalorder %s97, %s98
      %p110 = scmp.eq.s32.totalorder %s20, 2
      %p111 = por %p109, %p110
      %p113 = scmp.ne.s32.totalorder %s98, %s112
      %p114 = scmp.eq.s32.totalorder %s20, 0
      %p115 = por %p113, %p114
      %s117 = sadd.s32 %s116, 1
      %p120 = scmp.eq.s32.totalorder %s14, 2
      %p121 = scmp.ne.s32.totalorder %s116, %s118
      %p122 = scmp.eq.s32.totalorder %s14, 0
      %p123 = por %p121, %p122
      %p124 = scmp.ne.s32.totalorder %s116, %s118
      %p125 = scmp.eq.s32.totalorder %s19, 2
      %p126 = por %p124, %p125
      %p127 = scmp.ne.s32.totalorder %s118, %s119
      %p128 = scmp.eq.s32.totalorder %s19, 0
      %p129 = por %p127, %p128
      %p130 = scmp.ne.s32.totalorder %s118, %s119
      %p131 = scmp.eq.s32.totalorder %s20, 2
      %p132 = por %p130, %p131
      %p134 = scmp.ne.s32.totalorder %s119, %s133
      %p135 = scmp.eq.s32.totalorder %s20, 0
      %p136 = por %p134, %p135
      %s138 = sadd.s32 %s137, 1
      %p141 = scmp.eq.s32.totalorder %s14, 2
      %p142 = scmp.ne.s32.totalorder %s137, %s139
      %p143 = scmp.eq.s32.totalorder %s14, 0
      %p144 = por %p142, %p143
      %p145 = scmp.ne.s32.totalorder %s137, %s139
      %p146 = scmp.eq.s32.totalorder %s19, 2
      %p147 = por %p145, %p146
      %p148 = scmp.ne.s32.totalorder %s139, %s140
      %p149 = scmp.eq.s32.totalorder %s19, 0
      %p150 = por %p148, %p149
      %p151 = scmp.ne.s32.totalorder %s139, %s140
      %p152 = scmp.eq.s32.totalorder %s20, 2
      %p153 = por %p151, %p152
      %p155 = scmp.ne.s32.totalorder %s140, %s154
      %p156 = scmp.eq.s32.totalorder %s20, 0
      %p157 = por %p155, %p156
      %s159 = sadd.s32 %s158, 1
      %p162 = scmp.eq.s32.totalorder %s14, 2
      %p163 = scmp.ne.s32.totalorder %s158, %s160
      %p164 = scmp.eq.s32.totalorder %s14, 0
      %p165 = por %p163, %p164
      %p166 = scmp.ne.s32.totalorder %s158, %s160
      %p167 = scmp.eq.s32.totalorder %s19, 2
      %p168 = por %p166, %p167
      %p169 = scmp.ne.s32.totalorder %s160, %s161
      %p170 = scmp.eq.s32.totalorder %s19, 0
      %p171 = por %p169, %p170
      %p172 = scmp.ne.s32.totalorder %s160, %s161
      %p173 = scmp.eq.s32.totalorder %s20, 2
      %p174 = por %p172, %p173
      %p176 = scmp.ne.s32.totalorder %s161, %s175
      %p177 = scmp.eq.s32.totalorder %s20, 0
      %p178 = por %p176, %p177
      %s179 = ssub.s32 %s14, %s21
      %p180 = scmp.eq.s32.totalorder %s179, 0
      %s182 = sadd.s32 %s181, 1
      %s183 = scalar_select %p180, %s181, %s182
      %p186 = pneg %p180
      %p187 = scmp.eq.s32.totalorder %s14, 2
      %p188 = por %p186, %p187
      %p189 = scmp.ne.s32.totalorder %s181, %s184
      %p190 = scmp.eq.s32.totalorder %s14, 0
      %p191 = por %p189, %p190
      %p192 = scmp.ne.s32.totalorder %s181, %s184
      %p193 = scmp.eq.s32.totalorder %s19, 2
      %p194 = por %p192, %p193
      %p195 = scmp.ne.s32.totalorder %s184, %s185
      %p196 = scmp.eq.s32.totalorder %s19, 0
      %p197 = por %p195, %p196
      %p198 = scmp.ne.s32.totalorder %s184, %s185
      %p199 = scmp.eq.s32.totalorder %s20, 2
      %p200 = por %p198, %p199
      %p202 = scmp.ne.s32.totalorder %s185, %s201
      %p203 = scmp.eq.s32.totalorder %s20, 0
      %p204 = por %p202, %p203
      %p205 = scmp.le.s32.totalorder 1, %s14
      %p206 = scmp.lt.s32.totalorder %s14, 4
      %p207 = pnand %p205, %p206
      %p208 = pneg %p207
      // Predicated region
      $region9: #{discriminator_forward.1} parent=5 // pred_check
        _
      $region10: #{discriminator_forward.1} parent=5 // pred_check_branch
        %210 = sbr.rel (%p207) target = $region12
      $region11: #{discriminator_forward.1} parent=5 // pred_region
        %s211 = ssub.s32 %s14, 1
        // Predicated region
        $region13: #{discriminator_forward.1} parent=11 // pred_check
          %p212 = pneg %p87
        $region14: #{discriminator_forward.1} parent=11 // pred_check_branch
          %214 = sbr.rel (%p212) target = $region16
        $region15: #{discriminator_forward.1} parent=11 // pred_region
          _
        $region16: #{discriminator_forward.1} parent=11 // pred_fallthru
          _
        // Predicated region
        $region17: #{discriminator_forward.1} parent=11 // pred_check
          %p215 = pneg %p108
        $region18: #{discriminator_forward.1} parent=11 // pred_check_branch
          %217 = sbr.rel (%p215) target = $region20
        $region19: #{discriminator_forward.1} parent=11 // pred_region
          _
        $region20: #{discriminator_forward.1} parent=11 // pred_fallthru
          _
        // Predicated region
        $region21: #{discriminator_forward.1} parent=11 // pred_check
          %p218 = pneg %p129
        $region22: #{discriminator_forward.1} parent=11 // pred_check_branch
          %220 = sbr.rel (%p218) target = $region24
        $region23: #{discriminator_forward.1} parent=11 // pred_region
          _
        $region24: #{discriminator_forward.1} parent=11 // pred_fallthru
          _
        // Predicated region
        $region25: #{discriminator_forward.1} parent=11 // pred_check
          %p221 = pneg %p150
        $region26: #{discriminator_forward.1} parent=11 // pred_check_branch
          %223 = sbr.rel (%p221) target = $region28
        $region27: #{discriminator_forward.1} parent=11 // pred_region
          _
        $region28: #{discriminator_forward.1} parent=11 // pred_fallthru
          _
        // Predicated region
        $region29: #{discriminator_forward.1} parent=11 // pred_check
          %p224 = pneg %p171
        $region30: #{discriminator_forward.1} parent=11 // pred_check_branch
          %226 = sbr.rel (%p224) target = $region32
        $region31: #{discriminator_forward.1} parent=11 // pred_region
          _
        $region32: #{discriminator_forward.1} parent=11 // pred_fallthru
          _
      $region12: #{discriminator_forward.1} parent=5 // pred_fallthru
        _
      %p227 = scmp.lt.s32.totalorder %s14, 3
      // Predicated region
      $region33: #{discriminator_forward.1} parent=5 // pred_check
        %p228 = pneg %p227
      $region34: #{discriminator_forward.1} parent=5 // pred_check_branch
        %230 = sbr.rel (%p228) target = $region36
      $region35: #{discriminator_forward.1} parent=5 // pred_region
        // Predicated region
        $region37: #{discriminator_forward.1} parent=35 // pred_check
          %p231 = pneg %p34
        $region38: #{discriminator_forward.1} parent=35 // pred_check_branch
          %233 = sbr.rel (%p231) target = $region40
        $region39: #{discriminator_forward.1} parent=35 // pred_region
          %s234 = smul.u32 16, %s14
          %s235 = ssub.s32 38, %s234
          %p236 = scmp.lt.s32.totalorder %s235, 16
          %s237 = scalar_select %p236, %s235, 16
          %s238 = smul.u32 8, %s237
          %p239 = scmp.lt.s32.totalorder %s234, 37
          %s240 = scalar_select %p239, %s234, 37
          %s241 = smul.addr %s240, 8
          %s242 = scalar_lea.vmem %s0, %s241
          %s243 = smul.u32 16, %s14
          %s244 = ssub.s32 38, %s243
          %p245 = scmp.lt.s32.totalorder %s244, 16
          %s246 = scalar_select %p245, %s244, 16
          %s247 = smul.u32 8, %s246
        $region40: #{discriminator_forward.1} parent=35 // pred_fallthru
          _
        // Predicated region
        $region41: #{discriminator_forward.1} parent=35 // pred_check
          %p248 = pneg %p60
        $region42: #{discriminator_forward.1} parent=35 // pred_check_branch
          %250 = sbr.rel (%p248) target = $region44
        $region43: #{discriminator_forward.1} parent=35 // pred_region
          %s251 = smul.u32 16, %s14
          %s252 = ssub.s32 38, %s251
          %p253 = scmp.lt.s32.totalorder %s252, 16
          %s254 = scalar_select %p253, %s252, 16
          %s255 = smul.u32 8, %s254
          %p256 = scmp.lt.s32.totalorder %s251, 37
          %s257 = scalar_select %p256, %s251, 37
          %s258 = smul.addr %s257, 8
          %s259 = scalar_lea.vmem %s1, %s258
          %s260 = smul.u32 16, %s14
          %s261 = ssub.s32 38, %s260
          %p262 = scmp.lt.s32.totalorder %s261, 16
          %s263 = scalar_select %p262, %s261, 16
          %s264 = smul.u32 8, %s263
        $region44: #{discriminator_forward.1} parent=35 // pred_fallthru
          _
      $region36: #{discriminator_forward.1} parent=5 // pred_fallthru
        _
      %p265 = scmp.le.s32.totalorder 1, %s14
      %p266 = scmp.lt.s32.totalorder %s14, 4
      %p267 = pnand %p265, %p266
      %p268 = pneg %p267
      // Predicated region
      $region45: #{discriminator_forward.1} parent=5 // pred_check
        _
      $region46: #{discriminator_forward.1} parent=5 // pred_check_branch
        %270 = sbr.rel (%p267) target = $region48
      $region47: #{discriminator_forward.1} parent=5 // pred_region
        %s271 = ssub.s32 %s14, 1
        %s272 = smul.u32 16, %s19
        %s273 = ssub.s32 38, %s272
        %p274 = scmp.lt.s32.totalorder %s273, 16
        %s275 = scalar_select %p274, %s273, 16
        %s276 = smul.u32 8, %s275
        %p277 = scmp.lt.s32.totalorder %s272, 37
        %s278 = scalar_select %p277, %s272, 37
        %s279 = smul.addr %s278, 8
        %s280 = scalar_lea.vmem %s0, %s279
        %p281 = pneg %p40
        %p282 = pneg %p37
        %s283 = smul.u32 16, %s19
        %s284 = ssub.s32 38, %s283
        %p285 = scmp.lt.s32.totalorder %s284, 16
        %s286 = scalar_select %p285, %s284, 16
        %s287 = smul.u32 8, %s286
        %p288 = scmp.lt.s32.totalorder %s283, 37
        %s289 = scalar_select %p288, %s283, 37
        %s290 = smul.addr %s289, 8
        %s291 = scalar_lea.vmem %s1, %s290
        %p292 = pneg %p66
        %p293 = pneg %p63
        %p294 = pneg %p87
        %p295 = pneg %p84
        %p296 = pneg %p108
        %p297 = pneg %p105
        %p298 = pneg %p129
        %p299 = pneg %p126
        %p300 = pneg %p150
        %p301 = pneg %p147
        %p302 = pneg %p171
        %p303 = pneg %p168
        %p304 = pneg %p197
        %p305 = pneg %p194
        %s306 = sand.u32 %s184, 1
        %s307 = sand.u32 %s184, 1
        %s308 = smul.addr %s307, 128
        %s309 = scalar_lea.vmem [#allocation3], %s308
        %s310 = smul.u32 16, %s19
        %s311 = ssub.s32 38, %s310
        %p312 = scmp.lt.s32.totalorder %s311, 16
        %s313 = scalar_select %p312, %s311, 16
        %s314 = smul.u32 8, %s313
        %p315 = scmp.lt.s32.totalorder %s310, 37
        %s316 = scalar_select %p315, %s310, 37
        %s317 = smul.addr %s316, 8
        %s318 = scalar_lea.vmem %s0, %s317
        %s319 = smul.u32 16, %s19
        %s320 = ssub.s32 38, %s319
        %p321 = scmp.lt.s32.totalorder %s320, 16
        %s322 = scalar_select %p321, %s320, 16
        %s323 = smul.u32 8, %s322
        %s324 = smul.u32 16, %s19
        %s325 = ssub.s32 38, %s324
        %p326 = scmp.lt.s32.totalorder %s325, 16
        %s327 = scalar_select %p326, %s325, 16
        %s328 = smul.u32 8, %s327
        %p329 = scmp.lt.s32.totalorder %s324, 37
        %s330 = scalar_select %p329, %s324, 37
        %s331 = smul.addr %s330, 8
        %s332 = scalar_lea.vmem %s1, %s331
        %s333 = smul.u32 16, %s19
        %s334 = ssub.s32 38, %s333
        %p335 = scmp.lt.s32.totalorder %s334, 16
        %s336 = scalar_select %p335, %s334, 16
        %s337 = smul.u32 8, %s336
        %s338 = smul.u32 16, %s19
        %s339 = ssub.s32 38, %s338
        %p340 = scmp.lt.s32.totalorder %s339, 16
        %s341 = scalar_select %p340, %s339, 16
        %s342 = smul.u32 8, %s341
        %v343 = vlaneseq
        %v344 = vand.u32 %v343, 127
        %v345 = vld [vmem:[%s332] sm:$0xff]
        %v346 = vld [vmem:[%s332 + $0x8] sm:$0xff]
        %v347 = vld [vmem:[%s332 + $0x10] sm:$0xff]
        %v348 = vld [vmem:[%s332 + $0x18] sm:$0xff]
        %v349 = vld [vmem:[%s332 + $0x20] sm:$0xff]
        %v350 = vld [vmem:[%s332 + $0x28] sm:$0xff]
        %v351 = vld [vmem:[%s332 + $0x30] sm:$0xff]
        %v352 = vld [vmem:[%s332 + $0x38] sm:$0xff]
        %v353 = vld [vmem:[%s332 + $0x40] sm:$0xff]
        %v354 = vld [vmem:[%s332 + $0x48] sm:$0xff]
        %v355 = vld [vmem:[%s332 + $0x50] sm:$0xff]
        %v356 = vld [vmem:[%s332 + $0x58] sm:$0xff]
        %v357 = vld [vmem:[%s332 + $0x60] sm:$0xff]
        %v358 = vld [vmem:[%s332 + $0x68] sm:$0xff]
        %v359 = vld [vmem:[%s332 + $0x70] sm:$0xff]
        %v360 = vld [vmem:[%s332 + $0x78] sm:$0xff]
        %361 = vset.pattern.permute.xlu0 0
        %362 = vperm.xlu0 %361, %v345
        %v363 = vpop.permute.xlu0 %362
        %364 = vset.pattern.permute.xlu0 0
        %365 = vperm.xlu0 %364, %v346
        %v366 = vpop.permute.xlu0 %365
        %367 = vset.pattern.permute.xlu0 0
        %368 = vperm.xlu0 %367, %v347
        %v369 = vpop.permute.xlu0 %368
        %370 = vset.pattern.permute.xlu0 0
        %371 = vperm.xlu0 %370, %v348
        %v372 = vpop.permute.xlu0 %371
        %373 = vset.pattern.permute.xlu0 0
        %374 = vperm.xlu0 %373, %v349
        %v375 = vpop.permute.xlu0 %374
        %376 = vset.pattern.permute.xlu0 0
        %377 = vperm.xlu0 %376, %v350
        %v378 = vpop.permute.xlu0 %377
        %379 = vset.pattern.permute.xlu0 0
        %380 = vperm.xlu0 %379, %v351
        %v381 = vpop.permute.xlu0 %380
        %382 = vset.pattern.permute.xlu0 0
        %383 = vperm.xlu0 %382, %v352
        %v384 = vpop.permute.xlu0 %383
        %385 = vset.pattern.permute.xlu0 0
        %386 = vperm.xlu0 %385, %v353
        %v387 = vpop.permute.xlu0 %386
        %388 = vset.pattern.permute.xlu0 0
        %389 = vperm.xlu0 %388, %v354
        %v390 = vpop.permute.xlu0 %389
        %391 = vset.pattern.permute.xlu0 0
        %392 = vperm.xlu0 %391, %v355
        %v393 = vpop.permute.xlu0 %392
        %394 = vset.pattern.permute.xlu0 0
        %395 = vperm.xlu0 %394, %v356
        %v396 = vpop.permute.xlu0 %395
        %397 = vset.pattern.permute.xlu0 0
        %398 = vperm.xlu0 %397, %v357
        %v399 = vpop.permute.xlu0 %398
        %400 = vset.pattern.permute.xlu0 0
        %401 = vperm.xlu0 %400, %v358
        %v402 = vpop.permute.xlu0 %401
        %403 = vset.pattern.permute.xlu0 0
        %404 = vperm.xlu0 %403, %v359
        %v405 = vpop.permute.xlu0 %404
        %406 = vset.pattern.permute.xlu0 0
        %407 = vperm.xlu0 %406, %v360
        %v408 = vpop.permute.xlu0 %407
        %vm409 = vcmp.eq.s32.totalorder %v344, %v363
        %vm410 = vcmp.eq.s32.totalorder %v344, %v366
        %vm411 = vcmp.eq.s32.totalorder %v344, %v369
        %vm412 = vcmp.eq.s32.totalorder %v344, %v372
        %vm413 = vcmp.eq.s32.totalorder %v344, %v375
        %vm414 = vcmp.eq.s32.totalorder %v344, %v378
        %vm415 = vcmp.eq.s32.totalorder %v344, %v381
        %vm416 = vcmp.eq.s32.totalorder %v344, %v384
        %vm417 = vcmp.eq.s32.totalorder %v344, %v387
        %vm418 = vcmp.eq.s32.totalorder %v344, %v390
        %vm419 = vcmp.eq.s32.totalorder %v344, %v393
        %vm420 = vcmp.eq.s32.totalorder %v344, %v396
        %vm421 = vcmp.eq.s32.totalorder %v344, %v399
        %vm422 = vcmp.eq.s32.totalorder %v344, %v402
        %vm423 = vcmp.eq.s32.totalorder %v344, %v405
        %vm424 = vcmp.eq.s32.totalorder %v344, %v408
        %v425 = vsel %vm409, 1, 0
        %v426 = vsel %vm410, 1, 0
        %v427 = vsel %vm411, 1, 0
        %v428 = vsel %vm412, 1, 0
        %v429 = vsel %vm413, 1, 0
        %v430 = vsel %vm414, 1, 0
        %v431 = vsel %vm415, 1, 0
        %v432 = vsel %vm416, 1, 0
        %v433 = vsel %vm417, 1, 0
        %v434 = vsel %vm418, 1, 0
        %v435 = vsel %vm419, 1, 0
        %v436 = vsel %vm420, 1, 0
        %v437 = vsel %vm421, 1, 0
        %v438 = vsel %vm422, 1, 0
        %v439 = vsel %vm423, 1, 0
        %v440 = vsel %vm424, 1, 0
        %v441 = vcvt.s32.f32 %v425
        %v442 = vcvt.s32.f32 %v426
        %v443 = vcvt.s32.f32 %v427
        %v444 = vcvt.s32.f32 %v428
        %v445 = vcvt.s32.f32 %v429
        %v446 = vcvt.s32.f32 %v430
        %v447 = vcvt.s32.f32 %v431
        %v448 = vcvt.s32.f32 %v432
        %v449 = vcvt.s32.f32 %v433
        %v450 = vcvt.s32.f32 %v434
        %v451 = vcvt.s32.f32 %v435
        %v452 = vcvt.s32.f32 %v436
        %v453 = vcvt.s32.f32 %v437
        %v454 = vcvt.s32.f32 %v438
        %v455 = vcvt.s32.f32 %v439
        %v456 = vcvt.s32.f32 %v440
        %v457 = vld [vmem:[%s318] sm:$0xff]
        %v458 = vld [vmem:[%s318 + $0x8] sm:$0xff]
        %v459 = vld [vmem:[%s318 + $0x10] sm:$0xff]
        %v460 = vld [vmem:[%s318 + $0x18] sm:$0xff]
        %v461 = vld [vmem:[%s318 + $0x20] sm:$0xff]
        %v462 = vld [vmem:[%s318 + $0x28] sm:$0xff]
        %v463 = vld [vmem:[%s318 + $0x30] sm:$0xff]
        %v464 = vld [vmem:[%s318 + $0x38] sm:$0xff]
        %v465 = vld [vmem:[%s318 + $0x40] sm:$0xff]
        %v466 = vld [vmem:[%s318 + $0x48] sm:$0xff]
        %v467 = vld [vmem:[%s318 + $0x50] sm:$0xff]
        %v468 = vld [vmem:[%s318 + $0x58] sm:$0xff]
        %v469 = vld [vmem:[%s318 + $0x60] sm:$0xff]
        %v470 = vld [vmem:[%s318 + $0x68] sm:$0xff]
        %v471 = vld [vmem:[%s318 + $0x70] sm:$0xff]
        %v472 = vld [vmem:[%s318 + $0x78] sm:$0xff]
        %v473 = vld [vmem:[%s2] sm:$0xff]
        %v474 = vld [vmem:[%s2 + $0x8] sm:$0xff]
        %v475 = vld [vmem:[%s2 + $0x10] sm:$0xff]
        %v476 = vld [vmem:[%s2 + $0x18] sm:$0xff]
        %v477 = vld [vmem:[%s2 + $0x20] sm:$0xff]
        %v478 = vld [vmem:[%s2 + $0x28] sm:$0xff]
        %v479 = vld [vmem:[%s2 + $0x30] sm:$0xff]
        %v480 = vld [vmem:[%s2 + $0x38] sm:$0xff]
        %v481 = vld [vmem:[%s2 + $0x40] sm:$0xff]
        %v482 = vld [vmem:[%s2 + $0x48] sm:$0xff]
        %v483 = vld [vmem:[%s2 + $0x50] sm:$0xff]
        %v484 = vld [vmem:[%s2 + $0x58] sm:$0xff]
        %v485 = vld [vmem:[%s2 + $0x60] sm:$0xff]
        %v486 = vld [vmem:[%s2 + $0x68] sm:$0xff]
        %v487 = vld [vmem:[%s2 + $0x70] sm:$0xff]
        %v488 = vld [vmem:[%s2 + $0x78] sm:$0xff]
        %v489 = vld [vmem:[%s3] sm:$0xff]
        %v490 = vld [vmem:[%s3 + $0x8] sm:$0xff]
        %v491 = vld [vmem:[%s3 + $0x10] sm:$0xff]
        %v492 = vld [vmem:[%s3 + $0x18] sm:$0xff]
        %vm493 = vcmask 130048
        %v495 = vsel %vm493, %v441, 0
        %v498 = vsel %vm493, %v442, 0
        %v501 = vsel %vm493, %v443, 0
        %v504 = vsel %vm493, %v444, 0
        %v507 = vsel %vm493, %v445, 0
        %v510 = vsel %vm493, %v446, 0
        %v513 = vsel %vm493, %v447, 0
        %v516 = vsel %vm493, %v448, 0
        %v519 = vsel %vm493, %v449, 0
        %v522 = vsel %vm493, %v450, 0
        %v525 = vsel %vm493, %v451, 0
        %v528 = vsel %vm493, %v452, 0
        %v531 = vsel %vm493, %v453, 0
        %v534 = vsel %vm493, %v454, 0
        %v537 = vsel %vm493, %v455, 0
        %v540 = vsel %vm493, %v456, 0
        %542 = vmatpush.msra.mxu0 0.0
        %543 = vmatpush.msra.mxu0 0.0
        %544 = vmatpush.msra.mxu0 0.0
        %545 = vmatpush.msra.mxu0 0.0
        %546 = vmatpush.msra.mxu0 0.0
        %547 = vmatpush.msra.mxu0 0.0
        %548 = vmatpush.msra.mxu0 0.0
        %549 = vmatpush.msra.mxu0 0.0
        %550 = vmatpush.msra.mxu0 0.0
        %551 = vmatpush.msra.mxu0 0.0
        %552 = vmatpush.msra.mxu0 0.0
        %553 = vmatpush.msra.mxu0 0.0
        %554 = vmatpush.msra.mxu0 0.0
        %555 = vmatpush.msra.mxu0 0.0
        %556 = vmatpush.msra.mxu0 %v491
        %557 = vmatpush.msra.mxu0 %v489
        %558 = vmatmul.f32.gmra.mxu0 %v495
        %v559 = vpop.f32.mrf.mxu0
        %v560 = vadd.f32 0.0, %v559
        %561 = vmatmul.f32.gmra.mxu0 %v498
        %v562 = vpop.f32.mrf.mxu0
        %v563 = vadd.f32 0.0, %v562
        %564 = vmatmul.f32.gmra.mxu0 %v501
        %v565 = vpop.f32.mrf.mxu0
        %v566 = vadd.f32 0.0, %v565
        %567 = vmatmul.f32.gmra.mxu0 %v504
        %v568 = vpop.f32.mrf.mxu0
        %v569 = vadd.f32 0.0, %v568
        %570 = vmatmul.f32.gmra.mxu0 %v507
        %v571 = vpop.f32.mrf.mxu0
        %v572 = vadd.f32 0.0, %v571
        %573 = vmatmul.f32.gmra.mxu0 %v510
        %v574 = vpop.f32.mrf.mxu0
        %v575 = vadd.f32 0.0, %v574
        %576 = vmatmul.f32.gmra.mxu0 %v513
        %v577 = vpop.f32.mrf.mxu0
        %v578 = vadd.f32 0.0, %v577
        %579 = vmatmul.f32.gmra.mxu0 %v516
        %v580 = vpop.f32.mrf.mxu0
        %v581 = vadd.f32 0.0, %v580
        %582 = vmatmul.f32.gmra.mxu0 %v519
        %v583 = vpop.f32.mrf.mxu0
        %v584 = vadd.f32 0.0, %v583
        %585 = vmatmul.f32.gmra.mxu0 %v522
        %v586 = vpop.f32.mrf.mxu0
        %v587 = vadd.f32 0.0, %v586
        %588 = vmatmul.f32.gmra.mxu0 %v525
        %v589 = vpop.f32.mrf.mxu0
        %v590 = vadd.f32 0.0, %v589
        %591 = vmatmul.f32.gmra.mxu0 %v528
        %v592 = vpop.f32.mrf.mxu0
        %v593 = vadd.f32 0.0, %v592
        %594 = vmatmul.f32.gmra.mxu0 %v531
        %v595 = vpop.f32.mrf.mxu0
        %v596 = vadd.f32 0.0, %v595
        %597 = vmatmul.f32.gmra.mxu0 %v534
        %v598 = vpop.f32.mrf.mxu0
        %v599 = vadd.f32 0.0, %v598
        %600 = vmatmul.f32.gmra.mxu0 %v537
        %v601 = vpop.f32.mrf.mxu0
        %v602 = vadd.f32 0.0, %v601
        %603 = vmatmul.f32.gmra.mxu0 %v540
        %v604 = vpop.f32.mrf.mxu0
        %v605 = vadd.f32 0.0, %v604
        %606 = vdwg.mxu0
        %607 = vmatpush.msra.mxu0 0.0
        %608 = vmatpush.msra.mxu0 0.0
        %609 = vmatpush.msra.mxu0 0.0
        %610 = vmatpush.msra.mxu0 0.0
        %611 = vmatpush.msra.mxu0 0.0
        %612 = vmatpush.msra.mxu0 0.0
        %613 = vmatpush.msra.mxu0 0.0
        %614 = vmatpush.msra.mxu0 0.0
        %615 = vmatpush.msra.mxu0 0.0
        %616 = vmatpush.msra.mxu0 0.0
        %617 = vmatpush.msra.mxu0 0.0
        %618 = vmatpush.msra.mxu0 0.0
        %619 = vmatpush.msra.mxu0 0.0
        %620 = vmatpush.msra.mxu0 0.0
        %621 = vmatpush.msra.mxu0 %v492
        %622 = vmatpush.msra.mxu0 %v490
        %623 = vmatmul.f32.gmra.mxu0 %v495
        %v624 = vpop.f32.mrf.mxu0
        %v625 = vadd.f32 0.0, %v624
        %626 = vmatmul.f32.gmra.mxu0 %v498
        %v627 = vpop.f32.mrf.mxu0
        %v628 = vadd.f32 0.0, %v627
        %629 = vmatmul.f32.gmra.mxu0 %v501
        %v630 = vpop.f32.mrf.mxu0
        %v631 = vadd.f32 0.0, %v630
        %632 = vmatmul.f32.gmra.mxu0 %v504
        %v633 = vpop.f32.mrf.mxu0
        %v634 = vadd.f32 0.0, %v633
        %635 = vmatmul.f32.gmra.mxu0 %v507
        %v636 = vpop.f32.mrf.mxu0
        %v637 = vadd.f32 0.0, %v636
        %638 = vmatmul.f32.gmra.mxu0 %v510
        %v639 = vpop.f32.mrf.mxu0
        %v640 = vadd.f32 0.0, %v639
        %641 = vmatmul.f32.gmra.mxu0 %v513
        %v642 = vpop.f32.mrf.mxu0
        %v643 = vadd.f32 0.0, %v642
        %644 = vmatmul.f32.gmra.mxu0 %v516
        %v645 = vpop.f32.mrf.mxu0
        %v646 = vadd.f32 0.0, %v645
        %647 = vmatmul.f32.gmra.mxu0 %v519
        %v648 = vpop.f32.mrf.mxu0
        %v649 = vadd.f32 0.0, %v648
        %650 = vmatmul.f32.gmra.mxu0 %v522
        %v651 = vpop.f32.mrf.mxu0
        %v652 = vadd.f32 0.0, %v651
        %653 = vmatmul.f32.gmra.mxu0 %v525
        %v654 = vpop.f32.mrf.mxu0
        %v655 = vadd.f32 0.0, %v654
        %656 = vmatmul.f32.gmra.mxu0 %v528
        %v657 = vpop.f32.mrf.mxu0
        %v658 = vadd.f32 0.0, %v657
        %659 = vmatmul.f32.gmra.mxu0 %v531
        %v660 = vpop.f32.mrf.mxu0
        %v661 = vadd.f32 0.0, %v660
        %662 = vmatmul.f32.gmra.mxu0 %v534
        %v663 = vpop.f32.mrf.mxu0
        %v664 = vadd.f32 0.0, %v663
        %665 = vmatmul.f32.gmra.mxu0 %v537
        %v666 = vpop.f32.mrf.mxu0
        %v667 = vadd.f32 0.0, %v666
        %668 = vmatmul.f32.gmra.mxu0 %v540
        %v669 = vpop.f32.mrf.mxu0
        %v670 = vadd.f32 0.0, %v669
        %671 = vdwg.mxu0
        %vm672 = vcmask 523264
        %v674 = vsel %vm672, %v457, 0
        %v677 = vsel %vm672, %v458, 0
        %v680 = vsel %vm672, %v459, 0
        %v683 = vsel %vm672, %v460, 0
        %v686 = vsel %vm672, %v461, 0
        %v689 = vsel %vm672, %v462, 0
        %v692 = vsel %vm672, %v463, 0
        %v695 = vsel %vm672, %v464, 0
        %v698 = vsel %vm672, %v465, 0
        %v701 = vsel %vm672, %v466, 0
        %v704 = vsel %vm672, %v467, 0
        %v707 = vsel %vm672, %v468, 0
        %v710 = vsel %vm672, %v469, 0
        %v713 = vsel %vm672, %v470, 0
        %v716 = vsel %vm672, %v471, 0
        %v719 = vsel %vm672, %v472, 0
        %721 = vmatpush.msra.mxu0 0.0
        %722 = vmatpush.msra.mxu0 0.0
        %723 = vmatpush.msra.mxu0 0.0
        %724 = vmatpush.msra.mxu0 0.0
        %725 = vmatpush.msra.mxu0 0.0
        %726 = vmatpush.msra.mxu0 0.0
        %727 = vmatpush.msra.mxu0 0.0
        %728 = vmatpush.msra.mxu0 0.0
        %729 = vmatpush.msra.mxu0 %v487
        %730 = vmatpush.msra.mxu0 %v485
        %731 = vmatpush.msra.mxu0 %v483
        %732 = vmatpush.msra.mxu0 %v481
        %733 = vmatpush.msra.mxu0 %v479
        %734 = vmatpush.msra.mxu0 %v477
        %735 = vmatpush.msra.mxu0 %v475
        %736 = vmatpush.msra.mxu0 %v473
        %737 = vmatmul.f32.gmra.mxu0 %v674
        %v738 = vpop.f32.mrf.mxu0
        %v739 = vadd.f32 %v560, %v738
        %740 = vmatmul.f32.gmra.mxu0 %v677
        %v741 = vpop.f32.mrf.mxu0
        %v742 = vadd.f32 %v563, %v741
        %743 = vmatmul.f32.gmra.mxu0 %v680
        %v744 = vpop.f32.mrf.mxu0
        %v745 = vadd.f32 %v566, %v744
        %746 = vmatmul.f32.gmra.mxu0 %v683
        %v747 = vpop.f32.mrf.mxu0
        %v748 = vadd.f32 %v569, %v747
        %749 = vmatmul.f32.gmra.mxu0 %v686
        %v750 = vpop.f32.mrf.mxu0
        %v751 = vadd.f32 %v572, %v750
        %752 = vmatmul.f32.gmra.mxu0 %v689
        %v753 = vpop.f32.mrf.mxu0
        %v754 = vadd.f32 %v575, %v753
        %755 = vmatmul.f32.gmra.mxu0 %v692
        %v756 = vpop.f32.mrf.mxu0
        %v757 = vadd.f32 %v578, %v756
        %758 = vmatmul.f32.gmra.mxu0 %v695
        %v759 = vpop.f32.mrf.mxu0
        %v760 = vadd.f32 %v581, %v759
        %761 = vmatmul.f32.gmra.mxu0 %v698
        %v762 = vpop.f32.mrf.mxu0
        %v763 = vadd.f32 %v584, %v762
        %764 = vmatmul.f32.gmra.mxu0 %v701
        %v765 = vpop.f32.mrf.mxu0
        %v766 = vadd.f32 %v587, %v765
        %767 = vmatmul.f32.gmra.mxu0 %v704
        %v768 = vpop.f32.mrf.mxu0
        %v769 = vadd.f32 %v590, %v768
        %770 = vmatmul.f32.gmra.mxu0 %v707
        %v771 = vpop.f32.mrf.mxu0
        %v772 = vadd.f32 %v593, %v771
        %773 = vmatmul.f32.gmra.mxu0 %v710
        %v774 = vpop.f32.mrf.mxu0
        %v775 = vadd.f32 %v596, %v774
        %776 = vmatmul.f32.gmra.mxu0 %v713
        %v777 = vpop.f32.mrf.mxu0
        %v778 = vadd.f32 %v599, %v777
        %779 = vmatmul.f32.gmra.mxu0 %v716
        %v780 = vpop.f32.mrf.mxu0
        %v781 = vadd.f32 %v602, %v780
        %782 = vmatmul.f32.gmra.mxu0 %v719
        %v783 = vpop.f32.mrf.mxu0
        %v784 = vadd.f32 %v605, %v783
        %785 = vdwg.mxu0
        %786 = vmatpush.msra.mxu0 0.0
        %787 = vmatpush.msra.mxu0 0.0
        %788 = vmatpush.msra.mxu0 0.0
        %789 = vmatpush.msra.mxu0 0.0
        %790 = vmatpush.msra.mxu0 0.0
        %791 = vmatpush.msra.mxu0 0.0
        %792 = vmatpush.msra.mxu0 0.0
        %793 = vmatpush.msra.mxu0 0.0
        %794 = vmatpush.msra.mxu0 %v488
        %795 = vmatpush.msra.mxu0 %v486
        %796 = vmatpush.msra.mxu0 %v484
        %797 = vmatpush.msra.mxu0 %v482
        %798 = vmatpush.msra.mxu0 %v480
        %799 = vmatpush.msra.mxu0 %v478
        %800 = vmatpush.msra.mxu0 %v476
        %801 = vmatpush.msra.mxu0 %v474
        %802 = vmatmul.f32.gmra.mxu0 %v674
        %v803 = vpop.f32.mrf.mxu0
        %v804 = vadd.f32 %v625, %v803
        %805 = vmatmul.f32.gmra.mxu0 %v677
        %v806 = vpop.f32.mrf.mxu0
        %v807 = vadd.f32 %v628, %v806
        %808 = vmatmul.f32.gmra.mxu0 %v680
        %v809 = vpop.f32.mrf.mxu0
        %v810 = vadd.f32 %v631, %v809
        %811 = vmatmul.f32.gmra.mxu0 %v683
        %v812 = vpop.f32.mrf.mxu0
        %v813 = vadd.f32 %v634, %v812
        %814 = vmatmul.f32.gmra.mxu0 %v686
        %v815 = vpop.f32.mrf.mxu0
        %v816 = vadd.f32 %v637, %v815
        %817 = vmatmul.f32.gmra.mxu0 %v689
        %v818 = vpop.f32.mrf.mxu0
        %v819 = vadd.f32 %v640, %v818
        %820 = vmatmul.f32.gmra.mxu0 %v692
        %v821 = vpop.f32.mrf.mxu0
        %v822 = vadd.f32 %v643, %v821
        %823 = vmatmul.f32.gmra.mxu0 %v695
        %v824 = vpop.f32.mrf.mxu0
        %v825 = vadd.f32 %v646, %v824
        %826 = vmatmul.f32.gmra.mxu0 %v698
        %v827 = vpop.f32.mrf.mxu0
        %v828 = vadd.f32 %v649, %v827
        %829 = vmatmul.f32.gmra.mxu0 %v701
        %v830 = vpop.f32.mrf.mxu0
        %v831 = vadd.f32 %v652, %v830
        %832 = vmatmul.f32.gmra.mxu0 %v704
        %v833 = vpop.f32.mrf.mxu0
        %v834 = vadd.f32 %v655, %v833
        %835 = vmatmul.f32.gmra.mxu0 %v707
        %v836 = vpop.f32.mrf.mxu0
        %v837 = vadd.f32 %v658, %v836
        %838 = vmatmul.f32.gmra.mxu0 %v710
        %v839 = vpop.f32.mrf.mxu0
        %v840 = vadd.f32 %v661, %v839
        %841 = vmatmul.f32.gmra.mxu0 %v713
        %v842 = vpop.f32.mrf.mxu0
        %v843 = vadd.f32 %v664, %v842
        %844 = vmatmul.f32.gmra.mxu0 %v716
        %v845 = vpop.f32.mrf.mxu0
        %v846 = vadd.f32 %v667, %v845
        %847 = vmatmul.f32.gmra.mxu0 %v719
        %v848 = vpop.f32.mrf.mxu0
        %v849 = vadd.f32 %v670, %v848
        %850 = vdwg.mxu0
        %v851 = vld [vmem:[%s4] sm:$0x3]
        %v853 = vperm.slane %v851, 0
        %v854 = vperm.slane %v851, 1
        %v857 = vadd.f32 %v739, %v853
        %v858 = vadd.f32 %v804, %v854
        %v859 = vadd.f32 %v742, %v853
        %v860 = vadd.f32 %v807, %v854
        %v861 = vadd.f32 %v745, %v853
        %v862 = vadd.f32 %v810, %v854
        %v863 = vadd.f32 %v748, %v853
        %v864 = vadd.f32 %v813, %v854
        %v865 = vadd.f32 %v751, %v853
        %v866 = vadd.f32 %v816, %v854
        %v867 = vadd.f32 %v754, %v853
        %v868 = vadd.f32 %v819, %v854
        %v869 = vadd.f32 %v757, %v853
        %v870 = vadd.f32 %v822, %v854
        %v871 = vadd.f32 %v760, %v853
        %v872 = vadd.f32 %v825, %v854
        %v873 = vadd.f32 %v763, %v853
        %v874 = vadd.f32 %v828, %v854
        %v875 = vadd.f32 %v766, %v853
        %v876 = vadd.f32 %v831, %v854
        %v877 = vadd.f32 %v769, %v853
        %v878 = vadd.f32 %v834, %v854
        %v879 = vadd.f32 %v772, %v853
        %v880 = vadd.f32 %v837, %v854
        %v881 = vadd.f32 %v775, %v853
        %v882 = vadd.f32 %v840, %v854
        %v883 = vadd.f32 %v778, %v853
        %v884 = vadd.f32 %v843, %v854
        %v885 = vadd.f32 %v781, %v853
        %v886 = vadd.f32 %v846, %v854
        %v887 = vadd.f32 %v784, %v853
        %v888 = vadd.f32 %v849, %v854
        %v889 = vmax.f32 %v857, 0.0
        %v890 = vmax.f32 %v858, 0.0
        %v891 = vmax.f32 %v859, 0.0
        %v892 = vmax.f32 %v860, 0.0
        %v893 = vmax.f32 %v861, 0.0
        %v894 = vmax.f32 %v862, 0.0
        %v895 = vmax.f32 %v863, 0.0
        %v896 = vmax.f32 %v864, 0.0
        %v897 = vmax.f32 %v865, 0.0
        %v898 = vmax.f32 %v866, 0.0
        %v899 = vmax.f32 %v867, 0.0
        %v900 = vmax.f32 %v868, 0.0
        %v901 = vmax.f32 %v869, 0.0
        %v902 = vmax.f32 %v870, 0.0
        %v903 = vmax.f32 %v871, 0.0
        %v904 = vmax.f32 %v872, 0.0
        %v905 = vmax.f32 %v873, 0.0
        %v906 = vmax.f32 %v874, 0.0
        %v907 = vmax.f32 %v875, 0.0
        %v908 = vmax.f32 %v876, 0.0
        %v909 = vmax.f32 %v877, 0.0
        %v910 = vmax.f32 %v878, 0.0
        %v911 = vmax.f32 %v879, 0.0
        %v912 = vmax.f32 %v880, 0.0
        %v913 = vmax.f32 %v881, 0.0
        %v914 = vmax.f32 %v882, 0.0
        %v915 = vmax.f32 %v883, 0.0
        %v916 = vmax.f32 %v884, 0.0
        %v917 = vmax.f32 %v885, 0.0
        %v918 = vmax.f32 %v886, 0.0
        %v919 = vmax.f32 %v887, 0.0
        %v920 = vmax.f32 %v888, 0.0
        %v921 = vld [vmem:[%s5] sm:$0x3]
        %v923 = vperm.slane %v921, 0
        %v924 = vperm.slane %v921, 1
        %v927 = vmul.f32 %v889, %v923
        %v928 = vmul.f32 %v890, %v924
        %v929 = vmul.f32 %v891, %v923
        %v930 = vmul.f32 %v892, %v924
        %v931 = vmul.f32 %v893, %v923
        %v932 = vmul.f32 %v894, %v924
        %v933 = vmul.f32 %v895, %v923
        %v934 = vmul.f32 %v896, %v924
        %v935 = vmul.f32 %v897, %v923
        %v936 = vmul.f32 %v898, %v924
        %v937 = vmul.f32 %v899, %v923
        %v938 = vmul.f32 %v900, %v924
        %v939 = vmul.f32 %v901, %v923
        %v940 = vmul.f32 %v902, %v924
        %v941 = vmul.f32 %v903, %v923
        %v942 = vmul.f32 %v904, %v924
        %v943 = vmul.f32 %v905, %v923
        %v944 = vmul.f32 %v906, %v924
        %v945 = vmul.f32 %v907, %v923
        %v946 = vmul.f32 %v908, %v924
        %v947 = vmul.f32 %v909, %v923
        %v948 = vmul.f32 %v910, %v924
        %v949 = vmul.f32 %v911, %v923
        %v950 = vmul.f32 %v912, %v924
        %v951 = vmul.f32 %v913, %v923
        %v952 = vmul.f32 %v914, %v924
        %v953 = vmul.f32 %v915, %v923
        %v954 = vmul.f32 %v916, %v924
        %v955 = vmul.f32 %v917, %v923
        %v956 = vmul.f32 %v918, %v924
        %v957 = vmul.f32 %v919, %v923
        %v958 = vmul.f32 %v920, %v924
        %v959 = vadd.f32 %v927, %v928
        %960 = vadd.xlane.f32.xlu0 %v959
        %v961 = vpop.xlane.xlu0 %960
        %v962 = vadd.f32 %v929, %v930
        %963 = vadd.xlane.f32.xlu0 %v962
        %v964 = vpop.xlane.xlu0 %963
        %v965 = vadd.f32 %v931, %v932
        %966 = vadd.xlane.f32.xlu0 %v965
        %v967 = vpop.xlane.xlu0 %966
        %v968 = vadd.f32 %v933, %v934
        %969 = vadd.xlane.f32.xlu0 %v968
        %v970 = vpop.xlane.xlu0 %969
        %v971 = vadd.f32 %v935, %v936
        %972 = vadd.xlane.f32.xlu0 %v971
        %v973 = vpop.xlane.xlu0 %972
        %v974 = vadd.f32 %v937, %v938
        %975 = vadd.xlane.f32.xlu0 %v974
        %v976 = vpop.xlane.xlu0 %975
        %v977 = vadd.f32 %v939, %v940
        %978 = vadd.xlane.f32.xlu0 %v977
        %v979 = vpop.xlane.xlu0 %978
        %v980 = vadd.f32 %v941, %v942
        %981 = vadd.xlane.f32.xlu0 %v980
        %v982 = vpop.xlane.xlu0 %981
        %v983 = vadd.f32 %v943, %v944
        %984 = vadd.xlane.f32.xlu0 %v983
        %v985 = vpop.xlane.xlu0 %984
        %v986 = vadd.f32 %v945, %v946
        %987 = vadd.xlane.f32.xlu0 %v986
        %v988 = vpop.xlane.xlu0 %987
        %v989 = vadd.f32 %v947, %v948
        %990 = vadd.xlane.f32.xlu0 %v989
        %v991 = vpop.xlane.xlu0 %990
        %v992 = vadd.f32 %v949, %v950
        %993 = vadd.xlane.f32.xlu0 %v992
        %v994 = vpop.xlane.xlu0 %993
        %v995 = vadd.f32 %v951, %v952
        %996 = vadd.xlane.f32.xlu0 %v995
        %v997 = vpop.xlane.xlu0 %996
        %v998 = vadd.f32 %v953, %v954
        %999 = vadd.xlane.f32.xlu0 %v998
        %v1000 = vpop.xlane.xlu0 %999
        %v1001 = vadd.f32 %v955, %v956
        %1002 = vadd.xlane.f32.xlu0 %v1001
        %v1003 = vpop.xlane.xlu0 %1002
        %v1004 = vadd.f32 %v957, %v958
        %1005 = vadd.xlane.f32.xlu0 %v1004
        %v1006 = vpop.xlane.xlu0 %1005
        %s1007 = sld [smem:[#allocation2]]
        %v1008 = vstv %s1007
        %v1009 = vadd.f32 %v961, %v1008
        %v1010 = vadd.f32 %v964, %v1008
        %v1011 = vadd.f32 %v967, %v1008
        %v1012 = vadd.f32 %v970, %v1008
        %v1013 = vadd.f32 %v973, %v1008
        %v1014 = vadd.f32 %v976, %v1008
        %v1015 = vadd.f32 %v979, %v1008
        %v1016 = vadd.f32 %v982, %v1008
        %v1017 = vadd.f32 %v985, %v1008
        %v1018 = vadd.f32 %v988, %v1008
        %v1019 = vadd.f32 %v991, %v1008
        %v1020 = vadd.f32 %v994, %v1008
        %v1021 = vadd.f32 %v997, %v1008
        %v1022 = vadd.f32 %v1000, %v1008
        %v1023 = vadd.f32 %v1003, %v1008
        %v1024 = vadd.f32 %v1006, %v1008
        %v1025 = vxor.u32 %v1009, 2147483648
        %v1026 = vxor.u32 %v1010, 2147483648
        %v1027 = vxor.u32 %v1011, 2147483648
        %v1028 = vxor.u32 %v1012, 2147483648
        %v1029 = vxor.u32 %v1013, 2147483648
        %v1030 = vxor.u32 %v1014, 2147483648
        %v1031 = vxor.u32 %v1015, 2147483648
        %v1032 = vxor.u32 %v1016, 2147483648
        %v1033 = vxor.u32 %v1017, 2147483648
        %v1034 = vxor.u32 %v1018, 2147483648
        %v1035 = vxor.u32 %v1019, 2147483648
        %v1036 = vxor.u32 %v1020, 2147483648
        %v1037 = vxor.u32 %v1021, 2147483648
        %v1038 = vxor.u32 %v1022, 2147483648
        %v1039 = vxor.u32 %v1023, 2147483648
        %v1040 = vxor.u32 %v1024, 2147483648
        %v1041 = vmul.f32 %v1025, 1.442695
        %v1042 = vpow.pop %v1041
        %v1043 = vmul.f32 %v1026, 1.442695
        %v1044 = vpow.pop %v1043
        %v1045 = vmul.f32 %v1027, 1.442695
        %v1046 = vpow.pop %v1045
        %v1047 = vmul.f32 %v1028, 1.442695
        %v1048 = vpow.pop %v1047
        %v1049 = vmul.f32 %v1029, 1.442695
        %v1050 = vpow.pop %v1049
        %v1051 = vmul.f32 %v1030, 1.442695
        %v1052 = vpow.pop %v1051
        %v1053 = vmul.f32 %v1031, 1.442695
        %v1054 = vpow.pop %v1053
        %v1055 = vmul.f32 %v1032, 1.442695
        %v1056 = vpow.pop %v1055
        %v1057 = vmul.f32 %v1033, 1.442695
        %v1058 = vpow.pop %v1057
        %v1059 = vmul.f32 %v1034, 1.442695
        %v1060 = vpow.pop %v1059
        %v1061 = vmul.f32 %v1035, 1.442695
        %v1062 = vpow.pop %v1061
        %v1063 = vmul.f32 %v1036, 1.442695
        %v1064 = vpow.pop %v1063
        %v1065 = vmul.f32 %v1037, 1.442695
        %v1066 = vpow.pop %v1065
        %v1067 = vmul.f32 %v1038, 1.442695
        %v1068 = vpow.pop %v1067
        %v1069 = vmul.f32 %v1039, 1.442695
        %v1070 = vpow.pop %v1069
        %v1071 = vmul.f32 %v1040, 1.442695
        %v1072 = vpow.pop %v1071
        %v1073 = vadd.f32 %v1042, 1.0
        %v1074 = vadd.f32 %v1044, 1.0
        %v1075 = vadd.f32 %v1046, 1.0
        %v1076 = vadd.f32 %v1048, 1.0
        %v1077 = vadd.f32 %v1050, 1.0
        %v1078 = vadd.f32 %v1052, 1.0
        %v1079 = vadd.f32 %v1054, 1.0
        %v1080 = vadd.f32 %v1056, 1.0
        %v1081 = vadd.f32 %v1058, 1.0
        %v1082 = vadd.f32 %v1060, 1.0
        %v1083 = vadd.f32 %v1062, 1.0
        %v1084 = vadd.f32 %v1064, 1.0
        %v1085 = vadd.f32 %v1066, 1.0
        %v1086 = vadd.f32 %v1068, 1.0
        %v1087 = vadd.f32 %v1070, 1.0
        %v1088 = vadd.f32 %v1072, 1.0
        %v1089 = vrcp.pop %v1073
        %v1090 = vmul.f32 %v1073, %v1089
        %v1091 = vsub.f32 1.0, %v1090
        %v1092 = vmul.f32 %v1089, %v1091
        %v1093 = vadd.f32 %v1089, %v1092
        %vm1094 = vweird.f32 %v1073
        %vm1095 = vweird.f32 %v1089
        %vm1096 = vmor %vm1094, %vm1095
        %v1097 = vsel %vm1096, %v1089, %v1093
        %v1098 = vand.u32 2147483647, %v1073
        %vm1099 = vcmp.eq.f32.partialorder %v1098, 8.507059e+37
        %v1100 = vand.u32 %v1073, 2147483648
        %v1101 = vor.u32 1.1754944e-38, %v1100
        %v1102 = vsel %vm1099, %v1101, %v1097
        %v1103 = vmul.f32 1.0, %v1102
        %v1104 = vrcp.pop %v1074
        %v1105 = vmul.f32 %v1074, %v1104
        %v1106 = vsub.f32 1.0, %v1105
        %v1107 = vmul.f32 %v1104, %v1106
        %v1108 = vadd.f32 %v1104, %v1107
        %vm1109 = vweird.f32 %v1074
        %vm1110 = vweird.f32 %v1104
        %vm1111 = vmor %vm1109, %vm1110
        %v1112 = vsel %vm1111, %v1104, %v1108
        %v1113 = vand.u32 2147483647, %v1074
        %vm1114 = vcmp.eq.f32.partialorder %v1113, 8.507059e+37
        %v1115 = vand.u32 %v1074, 2147483648
        %v1116 = vor.u32 1.1754944e-38, %v1115
        %v1117 = vsel %vm1114, %v1116, %v1112
        %v1118 = vmul.f32 1.0, %v1117
        %v1119 = vrcp.pop %v1075
        %v1120 = vmul.f32 %v1075, %v1119
        %v1121 = vsub.f32 1.0, %v1120
        %v1122 = vmul.f32 %v1119, %v1121
        %v1123 = vadd.f32 %v1119, %v1122
        %vm1124 = vweird.f32 %v1075
        %vm1125 = vweird.f32 %v1119
        %vm1126 = vmor %vm1124, %vm1125
        %v1127 = vsel %vm1126, %v1119, %v1123
        %v1128 = vand.u32 2147483647, %v1075
        %vm1129 = vcmp.eq.f32.partialorder %v1128, 8.507059e+37
        %v1130 = vand.u32 %v1075, 2147483648
        %v1131 = vor.u32 1.1754944e-38, %v1130
        %v1132 = vsel %vm1129, %v1131, %v1127
        %v1133 = vmul.f32 1.0, %v1132
        %v1134 = vrcp.pop %v1076
        %v1135 = vmul.f32 %v1076, %v1134
        %v1136 = vsub.f32 1.0, %v1135
        %v1137 = vmul.f32 %v1134, %v1136
        %v1138 = vadd.f32 %v1134, %v1137
        %vm1139 = vweird.f32 %v1076
        %vm1140 = vweird.f32 %v1134
        %vm1141 = vmor %vm1139, %vm1140
        %v1142 = vsel %vm1141, %v1134, %v1138
        %v1143 = vand.u32 2147483647, %v1076
        %vm1144 = vcmp.eq.f32.partialorder %v1143, 8.507059e+37
        %v1145 = vand.u32 %v1076, 2147483648
        %v1146 = vor.u32 1.1754944e-38, %v1145
        %v1147 = vsel %vm1144, %v1146, %v1142
        %v1148 = vmul.f32 1.0, %v1147
        %v1149 = vrcp.pop %v1077
        %v1150 = vmul.f32 %v1077, %v1149
        %v1151 = vsub.f32 1.0, %v1150
        %v1152 = vmul.f32 %v1149, %v1151
        %v1153 = vadd.f32 %v1149, %v1152
        %vm1154 = vweird.f32 %v1077
        %vm1155 = vweird.f32 %v1149
        %vm1156 = vmor %vm1154, %vm1155
        %v1157 = vsel %vm1156, %v1149, %v1153
        %v1158 = vand.u32 2147483647, %v1077
        %vm1159 = vcmp.eq.f32.partialorder %v1158, 8.507059e+37
        %v1160 = vand.u32 %v1077, 2147483648
        %v1161 = vor.u32 1.1754944e-38, %v1160
        %v1162 = vsel %vm1159, %v1161, %v1157
        %v1163 = vmul.f32 1.0, %v1162
        %v1164 = vrcp.pop %v1078
        %v1165 = vmul.f32 %v1078, %v1164
        %v1166 = vsub.f32 1.0, %v1165
        %v1167 = vmul.f32 %v1164, %v1166
        %v1168 = vadd.f32 %v1164, %v1167
        %vm1169 = vweird.f32 %v1078
        %vm1170 = vweird.f32 %v1164
        %vm1171 = vmor %vm1169, %vm1170
        %v1172 = vsel %vm1171, %v1164, %v1168
        %v1173 = vand.u32 2147483647, %v1078
        %vm1174 = vcmp.eq.f32.partialorder %v1173, 8.507059e+37
        %v1175 = vand.u32 %v1078, 2147483648
        %v1176 = vor.u32 1.1754944e-38, %v1175
        %v1177 = vsel %vm1174, %v1176, %v1172
        %v1178 = vmul.f32 1.0, %v1177
        %v1179 = vrcp.pop %v1079
        %v1180 = vmul.f32 %v1079, %v1179
        %v1181 = vsub.f32 1.0, %v1180
        %v1182 = vmul.f32 %v1179, %v1181
        %v1183 = vadd.f32 %v1179, %v1182
        %vm1184 = vweird.f32 %v1079
        %vm1185 = vweird.f32 %v1179
        %vm1186 = vmor %vm1184, %vm1185
        %v1187 = vsel %vm1186, %v1179, %v1183
        %v1188 = vand.u32 2147483647, %v1079
        %vm1189 = vcmp.eq.f32.partialorder %v1188, 8.507059e+37
        %v1190 = vand.u32 %v1079, 2147483648
        %v1191 = vor.u32 1.1754944e-38, %v1190
        %v1192 = vsel %vm1189, %v1191, %v1187
        %v1193 = vmul.f32 1.0, %v1192
        %v1194 = vrcp.pop %v1080
        %v1195 = vmul.f32 %v1080, %v1194
        %v1196 = vsub.f32 1.0, %v1195
        %v1197 = vmul.f32 %v1194, %v1196
        %v1198 = vadd.f32 %v1194, %v1197
        %vm1199 = vweird.f32 %v1080
        %vm1200 = vweird.f32 %v1194
        %vm1201 = vmor %vm1199, %vm1200
        %v1202 = vsel %vm1201, %v1194, %v1198
        %v1203 = vand.u32 2147483647, %v1080
        %vm1204 = vcmp.eq.f32.partialorder %v1203, 8.507059e+37
        %v1205 = vand.u32 %v1080, 2147483648
        %v1206 = vor.u32 1.1754944e-38, %v1205
        %v1207 = vsel %vm1204, %v1206, %v1202
        %v1208 = vmul.f32 1.0, %v1207
        %v1209 = vrcp.pop %v1081
        %v1210 = vmul.f32 %v1081, %v1209
        %v1211 = vsub.f32 1.0, %v1210
        %v1212 = vmul.f32 %v1209, %v1211
        %v1213 = vadd.f32 %v1209, %v1212
        %vm1214 = vweird.f32 %v1081
        %vm1215 = vweird.f32 %v1209
        %vm1216 = vmor %vm1214, %vm1215
        %v1217 = vsel %vm1216, %v1209, %v1213
        %v1218 = vand.u32 2147483647, %v1081
        %vm1219 = vcmp.eq.f32.partialorder %v1218, 8.507059e+37
        %v1220 = vand.u32 %v1081, 2147483648
        %v1221 = vor.u32 1.1754944e-38, %v1220
        %v1222 = vsel %vm1219, %v1221, %v1217
        %v1223 = vmul.f32 1.0, %v1222
        %v1224 = vrcp.pop %v1082
        %v1225 = vmul.f32 %v1082, %v1224
        %v1226 = vsub.f32 1.0, %v1225
        %v1227 = vmul.f32 %v1224, %v1226
        %v1228 = vadd.f32 %v1224, %v1227
        %vm1229 = vweird.f32 %v1082
        %vm1230 = vweird.f32 %v1224
        %vm1231 = vmor %vm1229, %vm1230
        %v1232 = vsel %vm1231, %v1224, %v1228
        %v1233 = vand.u32 2147483647, %v1082
        %vm1234 = vcmp.eq.f32.partialorder %v1233, 8.507059e+37
        %v1235 = vand.u32 %v1082, 2147483648
        %v1236 = vor.u32 1.1754944e-38, %v1235
        %v1237 = vsel %vm1234, %v1236, %v1232
        %v1238 = vmul.f32 1.0, %v1237
        %v1239 = vrcp.pop %v1083
        %v1240 = vmul.f32 %v1083, %v1239
        %v1241 = vsub.f32 1.0, %v1240
        %v1242 = vmul.f32 %v1239, %v1241
        %v1243 = vadd.f32 %v1239, %v1242
        %vm1244 = vweird.f32 %v1083
        %vm1245 = vweird.f32 %v1239
        %vm1246 = vmor %vm1244, %vm1245
        %v1247 = vsel %vm1246, %v1239, %v1243
        %v1248 = vand.u32 2147483647, %v1083
        %vm1249 = vcmp.eq.f32.partialorder %v1248, 8.507059e+37
        %v1250 = vand.u32 %v1083, 2147483648
        %v1251 = vor.u32 1.1754944e-38, %v1250
        %v1252 = vsel %vm1249, %v1251, %v1247
        %v1253 = vmul.f32 1.0, %v1252
        %v1254 = vrcp.pop %v1084
        %v1255 = vmul.f32 %v1084, %v1254
        %v1256 = vsub.f32 1.0, %v1255
        %v1257 = vmul.f32 %v1254, %v1256
        %v1258 = vadd.f32 %v1254, %v1257
        %vm1259 = vweird.f32 %v1084
        %vm1260 = vweird.f32 %v1254
        %vm1261 = vmor %vm1259, %vm1260
        %v1262 = vsel %vm1261, %v1254, %v1258
        %v1263 = vand.u32 2147483647, %v1084
        %vm1264 = vcmp.eq.f32.partialorder %v1263, 8.507059e+37
        %v1265 = vand.u32 %v1084, 2147483648
        %v1266 = vor.u32 1.1754944e-38, %v1265
        %v1267 = vsel %vm1264, %v1266, %v1262
        %v1268 = vmul.f32 1.0, %v1267
        %v1269 = vrcp.pop %v1085
        %v1270 = vmul.f32 %v1085, %v1269
        %v1271 = vsub.f32 1.0, %v1270
        %v1272 = vmul.f32 %v1269, %v1271
        %v1273 = vadd.f32 %v1269, %v1272
        %vm1274 = vweird.f32 %v1085
        %vm1275 = vweird.f32 %v1269
        %vm1276 = vmor %vm1274, %vm1275
        %v1277 = vsel %vm1276, %v1269, %v1273
        %v1278 = vand.u32 2147483647, %v1085
        %vm1279 = vcmp.eq.f32.partialorder %v1278, 8.507059e+37
        %v1280 = vand.u32 %v1085, 2147483648
        %v1281 = vor.u32 1.1754944e-38, %v1280
        %v1282 = vsel %vm1279, %v1281, %v1277
        %v1283 = vmul.f32 1.0, %v1282
        %v1284 = vrcp.pop %v1086
        %v1285 = vmul.f32 %v1086, %v1284
        %v1286 = vsub.f32 1.0, %v1285
        %v1287 = vmul.f32 %v1284, %v1286
        %v1288 = vadd.f32 %v1284, %v1287
        %vm1289 = vweird.f32 %v1086
        %vm1290 = vweird.f32 %v1284
        %vm1291 = vmor %vm1289, %vm1290
        %v1292 = vsel %vm1291, %v1284, %v1288
        %v1293 = vand.u32 2147483647, %v1086
        %vm1294 = vcmp.eq.f32.partialorder %v1293, 8.507059e+37
        %v1295 = vand.u32 %v1086, 2147483648
        %v1296 = vor.u32 1.1754944e-38, %v1295
        %v1297 = vsel %vm1294, %v1296, %v1292
        %v1298 = vmul.f32 1.0, %v1297
        %v1299 = vrcp.pop %v1087
        %v1300 = vmul.f32 %v1087, %v1299
        %v1301 = vsub.f32 1.0, %v1300
        %v1302 = vmul.f32 %v1299, %v1301
        %v1303 = vadd.f32 %v1299, %v1302
        %vm1304 = vweird.f32 %v1087
        %vm1305 = vweird.f32 %v1299
        %vm1306 = vmor %vm1304, %vm1305
        %v1307 = vsel %vm1306, %v1299, %v1303
        %v1308 = vand.u32 2147483647, %v1087
        %vm1309 = vcmp.eq.f32.partialorder %v1308, 8.507059e+37
        %v1310 = vand.u32 %v1087, 2147483648
        %v1311 = vor.u32 1.1754944e-38, %v1310
        %v1312 = vsel %vm1309, %v1311, %v1307
        %v1313 = vmul.f32 1.0, %v1312
        %v1314 = vrcp.pop %v1088
        %v1315 = vmul.f32 %v1088, %v1314
        %v1316 = vsub.f32 1.0, %v1315
        %v1317 = vmul.f32 %v1314, %v1316
        %v1318 = vadd.f32 %v1314, %v1317
        %vm1319 = vweird.f32 %v1088
        %vm1320 = vweird.f32 %v1314
        %vm1321 = vmor %vm1319, %vm1320
        %v1322 = vsel %vm1321, %v1314, %v1318
        %v1323 = vand.u32 2147483647, %v1088
        %vm1324 = vcmp.eq.f32.partialorder %v1323, 8.507059e+37
        %v1325 = vand.u32 %v1088, 2147483648
        %v1326 = vor.u32 1.1754944e-38, %v1325
        %v1327 = vsel %vm1324, %v1326, %v1322
        %v1328 = vmul.f32 1.0, %v1327
        %vm1329 = vcmask 7168
        %1330 = vst.msk [vmem:[%s309] sm:$0xff] %vm1329, %v1103
        %1331 = vst.msk [vmem:[%s309 + $0x8] sm:$0xff] %vm1329, %v1118
        %1332 = vst.msk [vmem:[%s309 + $0x10] sm:$0xff] %vm1329, %v1133
        %1333 = vst.msk [vmem:[%s309 + $0x18] sm:$0xff] %vm1329, %v1148
        %1334 = vst.msk [vmem:[%s309 + $0x20] sm:$0xff] %vm1329, %v1163
        %1335 = vst.msk [vmem:[%s309 + $0x28] sm:$0xff] %vm1329, %v1178
        %1336 = vst.msk [vmem:[%s309 + $0x30] sm:$0xff] %vm1329, %v1193
        %1337 = vst.msk [vmem:[%s309 + $0x38] sm:$0xff] %vm1329, %v1208
        %1338 = vst.msk [vmem:[%s309 + $0x40] sm:$0xff] %vm1329, %v1223
        %1339 = vst.msk [vmem:[%s309 + $0x48] sm:$0xff] %vm1329, %v1238
        %1340 = vst.msk [vmem:[%s309 + $0x50] sm:$0xff] %vm1329, %v1253
        %1341 = vst.msk [vmem:[%s309 + $0x58] sm:$0xff] %vm1329, %v1268
        %1342 = vst.msk [vmem:[%s309 + $0x60] sm:$0xff] %vm1329, %v1283
        %1343 = vst.msk [vmem:[%s309 + $0x68] sm:$0xff] %vm1329, %v1298
        %1344 = vst.msk [vmem:[%s309 + $0x70] sm:$0xff] %vm1329, %v1313
        %1345 = vst.msk [vmem:[%s309 + $0x78] sm:$0xff] %vm1329, %v1328
        %s1346 = sand.u32 %s184, 1
        %s1347 = sand.u32 %s184, 1
        %s1348 = smul.addr %s1347, 128
        %s1349 = scalar_lea.vmem [#allocation3], %s1348
        // Predicated region
        $region49: #{discriminator_forward.1} parent=47 // pred_check
          %p1350 = pneg %p194
        $region50: #{discriminator_forward.1} parent=47 // pred_check_branch
          %1352 = sbr.rel (%p1350) target = $region52
        $region51: #{discriminator_forward.1} parent=47 // pred_region
          %s1353 = smul.u32 16, %s19
          %s1354 = ssub.s32 38, %s1353
          %p1355 = scmp.lt.s32.totalorder %s1354, 16
          %s1356 = scalar_select %p1355, %s1354, 16
          %s1357 = smul.u32 8, %s1356
          %p1358 = scmp.ne.s32.totalorder 0, %s1357
          %s1359 = smul.addr %s1353, 8
          %s1360 = scalar_lea.vmem %s7, %s1359
          // Predicated region
          $region53: #{discriminator_forward.1} parent=51 // pred_check
            %p1361 = pneg %p1358
          $region54: #{discriminator_forward.1} parent=51 // pred_check_branch
            %1363 = sbr.rel (%p1361) target = $region56
          $region55: #{discriminator_forward.1} parent=51 // pred_region
            // Predicated region
            $region57: #{discriminator_forward.1} parent=55 // pred_check
              _
            $region58: #{discriminator_forward.1} parent=55 // pred_check_branch
              %1365 = sbr.rel (0) target = $region60
            $region59: #{discriminator_forward.1} parent=55 // pred_region
              // Predicated region
              $region79: #{discriminator_forward.1} parent=59 // pred_check
                _
              $region80: #{discriminator_forward.1} parent=59 // pred_check_branch
                %1445 = sbr.rel (0) target = $region82
              $region81: #{discriminator_forward.1} parent=59 // pred_region
                %s1446 = sshrl.u32 %s1356, 4
                // While loop
                $region83: #{discriminator_forward.1} parent=81 // loop_pre_header
                  _
                $region84: #{discriminator_forward.1} parent=81 // loop_header
                  %s1448 = sphi 0, %s1450
                  %p1449 = scmp.ge.s32.totalorder %s1448, %s1446
                  %s1453 = sphi 0, %s1490
                  %s1454 = sphi %s1349, %s1493
                  %s1455 = sphi %s1360, %s1494
                $region85: #{discriminator_forward.1} parent=81 // loop_header_branch
                  %1452 = sbr.rel (%p1449) target = $region89
                $region86: #{discriminator_forward.1} parent=81 // loop_body
                  %v1456 = vld [vmem:[%s1454] sm:$0xff]
                  %1457 = vst [vmem:[%s1455] sm:$0xff] %v1456
                  %v1458 = vld [vmem:[%s1454 + $0x8] sm:$0xff]
                  %1459 = vst [vmem:[%s1455 + $0x8] sm:$0xff] %v1458
                  %v1460 = vld [vmem:[%s1454 + $0x10] sm:$0xff]
                  %1461 = vst [vmem:[%s1455 + $0x10] sm:$0xff] %v1460
                  %v1462 = vld [vmem:[%s1454 + $0x18] sm:$0xff]
                  %1463 = vst [vmem:[%s1455 + $0x18] sm:$0xff] %v1462
                  %v1464 = vld [vmem:[%s1454 + $0x20] sm:$0xff]
                  %1465 = vst [vmem:[%s1455 + $0x20] sm:$0xff] %v1464
                  %v1466 = vld [vmem:[%s1454 + $0x28] sm:$0xff]
                  %1467 = vst [vmem:[%s1455 + $0x28] sm:$0xff] %v1466
                  %v1468 = vld [vmem:[%s1454 + $0x30] sm:$0xff]
                  %1469 = vst [vmem:[%s1455 + $0x30] sm:$0xff] %v1468
                  %v1470 = vld [vmem:[%s1454 + $0x38] sm:$0xff]
                  %1471 = vst [vmem:[%s1455 + $0x38] sm:$0xff] %v1470
                  %v1472 = vld [vmem:[%s1454 + $0x40] sm:$0xff]
                  %1473 = vst [vmem:[%s1455 + $0x40] sm:$0xff] %v1472
                  %v1474 = vld [vmem:[%s1454 + $0x48] sm:$0xff]
                  %1475 = vst [vmem:[%s1455 + $0x48] sm:$0xff] %v1474
                  %v1476 = vld [vmem:[%s1454 + $0x50] sm:$0xff]
                  %1477 = vst [vmem:[%s1455 + $0x50] sm:$0xff] %v1476
                  %v1478 = vld [vmem:[%s1454 + $0x58] sm:$0xff]
                  %1479 = vst [vmem:[%s1455 + $0x58] sm:$0xff] %v1478
                  %v1480 = vld [vmem:[%s1454 + $0x60] sm:$0xff]
                  %1481 = vst [vmem:[%s1455 + $0x60] sm:$0xff] %v1480
                  %v1482 = vld [vmem:[%s1454 + $0x68] sm:$0xff]
                  %1483 = vst [vmem:[%s1455 + $0x68] sm:$0xff] %v1482
                  %v1484 = vld [vmem:[%s1454 + $0x70] sm:$0xff]
                  %1485 = vst [vmem:[%s1455 + $0x70] sm:$0xff] %v1484
                  %v1486 = vld [vmem:[%s1454 + $0x78] sm:$0xff]
                  %1487 = vst [vmem:[%s1455 + $0x78] sm:$0xff] %v1486
                  %s1488 = sadd.s32 1, %s1453
                  %p1489 = scmp.ge.s32.totalorder %s1488, %s1446
                  %s1490 = scalar_select %p1489, 0, %s1488
                  %s1491 = smul.u32 %s1490, 128
                  %s1492 = smul.u32 %s1490, 128
                  %s1493 = scalar_lea.vmem %s1349, %s1491 [#allocation3]
                  %s1494 = scalar_lea.vmem %s1360, %s1492
                $region87: #{discriminator_forward.1} parent=81 // loop_footer
                  %s1450 = sadd.s32 %s1448, 1
                $region88: #{discriminator_forward.1} parent=81 // loop_footer_branch
                  %1447 = sbr.rel target = $region84
                $region89: #{discriminator_forward.1} parent=81 // loop_exit
                  _
                %s1495 = sshrl.u32 %s1356, 4
                %s1496 = sand.u32 %s1356, 15
                %s1497 = smul.u32 %s1495, 16
                %s1498 = smul.u32 8, %s1497
                %s1499 = scalar_lea.vmem %s1349, %s1498 [#allocation3]
                %s1500 = smul.u32 8, %s1497
                %s1501 = scalar_lea.vmem %s1360, %s1500
                // While loop
                $region90: #{discriminator_forward.1} parent=81 // loop_pre_header
                  _
                $region91: #{discriminator_forward.1} parent=81 // loop_header
                  %s1503 = sphi 0, %s1505
                  %p1504 = scmp.ge.s32.totalorder %s1503, %s1496
                  %s1508 = sphi 0, %s1515
                  %s1509 = sphi %s1499, %s1518
                  %s1510 = sphi %s1501, %s1519
                $region92: #{discriminator_forward.1} parent=81 // loop_header_branch
                  %1507 = sbr.rel (%p1504) target = $region96
                $region93: #{discriminator_forward.1} parent=81 // loop_body
                  %v1511 = vld [vmem:[%s1509] sm:$0xff]
                  %1512 = vst [vmem:[%s1510] sm:$0xff] %v1511
                  %s1513 = sadd.s32 1, %s1508
                  %p1514 = scmp.ge.s32.totalorder %s1513, %s1496
                  %s1515 = scalar_select %p1514, 0, %s1513
                  %s1516 = smul.u32 %s1515, 8
                  %s1517 = smul.u32 %s1515, 8
                  %s1518 = scalar_lea.vmem %s1499, %s1516 [#allocation3]
                  %s1519 = scalar_lea.vmem %s1501, %s1517
                $region94: #{discriminator_forward.1} parent=81 // loop_footer
                  %s1505 = sadd.s32 %s1503, 1
                $region95: #{discriminator_forward.1} parent=81 // loop_footer_branch
                  %1502 = sbr.rel target = $region91
                $region96: #{discriminator_forward.1} parent=81 // loop_exit
                  _
              $region82: #{discriminator_forward.1} parent=59 // pred_fallthru
                _
              // Predicated region
              $region97: #{discriminator_forward.1} parent=59 // pred_check
                _
              $region98: #{discriminator_forward.1} parent=59 // pred_check_branch
                %1521 = sbr.rel target = $region100
              $region99: #{discriminator_forward.1} parent=59 // pred_region
                _
              $region100: #{discriminator_forward.1} parent=59 // pred_fallthru
                _
            $region60: #{discriminator_forward.1} parent=55 // pred_fallthru
              _
            // Predicated region
            $region61: #{discriminator_forward.1} parent=55 // pred_check
              _
            $region62: #{discriminator_forward.1} parent=55 // pred_check_branch
              %1367 = sbr.rel target = $region64
            $region63: #{discriminator_forward.1} parent=55 // pred_region
              %s1369 = ssub.s32 256, 1
              %s1370 = sshrl.u32 %s1356, 4
              // While loop
              $region65: #{discriminator_forward.1} parent=63 // loop_pre_header
                _
              $region66: #{discriminator_forward.1} parent=63 // loop_header
                %s1372 = sphi 0, %s1374
                %p1373 = scmp.ge.s32.totalorder %s1372, %s1370
                %s1377 = sphi 0, %s1414
                %s1378 = sphi %s1349, %s1417
                %s1379 = sphi %s1360, %s1418
              $region67: #{discriminator_forward.1} parent=63 // loop_header_branch
                %1376 = sbr.rel (%p1373) target = $region71
              $region68: #{discriminator_forward.1} parent=63 // loop_body
                %v1380 = vld [vmem:[%s1378] sm:%s1369]
                %1381 = vst [vmem:[%s1379] sm:%s1369] %v1380
                %v1382 = vld [vmem:[%s1378 + $0x8] sm:%s1369]
                %1383 = vst [vmem:[%s1379 + $0x8] sm:%s1369] %v1382
                %v1384 = vld [vmem:[%s1378 + $0x10] sm:%s1369]
                %1385 = vst [vmem:[%s1379 + $0x10] sm:%s1369] %v1384
                %v1386 = vld [vmem:[%s1378 + $0x18] sm:%s1369]
                %1387 = vst [vmem:[%s1379 + $0x18] sm:%s1369] %v1386
                %v1388 = vld [vmem:[%s1378 + $0x20] sm:%s1369]
                %1389 = vst [vmem:[%s1379 + $0x20] sm:%s1369] %v1388
                %v1390 = vld [vmem:[%s1378 + $0x28] sm:%s1369]
                %1391 = vst [vmem:[%s1379 + $0x28] sm:%s1369] %v1390
                %v1392 = vld [vmem:[%s1378 + $0x30] sm:%s1369]
                %1393 = vst [vmem:[%s1379 + $0x30] sm:%s1369] %v1392
                %v1394 = vld [vmem:[%s1378 + $0x38] sm:%s1369]
                %1395 = vst [vmem:[%s1379 + $0x38] sm:%s1369] %v1394
                %v1396 = vld [vmem:[%s1378 + $0x40] sm:%s1369]
                %1397 = vst [vmem:[%s1379 + $0x40] sm:%s1369] %v1396
                %v1398 = vld [vmem:[%s1378 + $0x48] sm:%s1369]
                %1399 = vst [vmem:[%s1379 + $0x48] sm:%s1369] %v1398
                %v1400 = vld [vmem:[%s1378 + $0x50] sm:%s1369]
                %1401 = vst [vmem:[%s1379 + $0x50] sm:%s1369] %v1400
                %v1402 = vld [vmem:[%s1378 + $0x58] sm:%s1369]
                %1403 = vst [vmem:[%s1379 + $0x58] sm:%s1369] %v1402
                %v1404 = vld [vmem:[%s1378 + $0x60] sm:%s1369]
                %1405 = vst [vmem:[%s1379 + $0x60] sm:%s1369] %v1404
                %v1406 = vld [vmem:[%s1378 + $0x68] sm:%s1369]
                %1407 = vst [vmem:[%s1379 + $0x68] sm:%s1369] %v1406
                %v1408 = vld [vmem:[%s1378 + $0x70] sm:%s1369]
                %1409 = vst [vmem:[%s1379 + $0x70] sm:%s1369] %v1408
                %v1410 = vld [vmem:[%s1378 + $0x78] sm:%s1369]
                %1411 = vst [vmem:[%s1379 + $0x78] sm:%s1369] %v1410
                %s1412 = sadd.s32 1, %s1377
                %p1413 = scmp.ge.s32.totalorder %s1412, %s1370
                %s1414 = scalar_select %p1413, 0, %s1412
                %s1415 = smul.u32 %s1414, 128
                %s1416 = smul.u32 %s1414, 128
                %s1417 = scalar_lea.vmem %s1349, %s1415 [#allocation3]
                %s1418 = scalar_lea.vmem %s1360, %s1416
              $region69: #{discriminator_forward.1} parent=63 // loop_footer
                %s1374 = sadd.s32 %s1372, 1
              $region70: #{discriminator_forward.1} parent=63 // loop_footer_branch
                %1371 = sbr.rel target = $region66
              $region71: #{discriminator_forward.1} parent=63 // loop_exit
                _
              %s1419 = sshrl.u32 %s1356, 4
              %s1420 = sand.u32 %s1356, 15
              %s1421 = smul.u32 %s1419, 16
              %s1422 = smul.u32 8, %s1421
              %s1423 = scalar_lea.vmem %s1349, %s1422 [#allocation3]
              %s1424 = smul.u32 8, %s1421
              %s1425 = scalar_lea.vmem %s1360, %s1424
              // While loop
              $region72: #{discriminator_forward.1} parent=63 // loop_pre_header
                _
              $region73: #{discriminator_forward.1} parent=63 // loop_header
                %s1427 = sphi 0, %s1429
                %p1428 = scmp.ge.s32.totalorder %s1427, %s1420
                %s1432 = sphi 0, %s1439
                %s1433 = sphi %s1423, %s1442
                %s1434 = sphi %s1425, %s1443
              $region74: #{discriminator_forward.1} parent=63 // loop_header_branch
                %1431 = sbr.rel (%p1428) target = $region78
              $region75: #{discriminator_forward.1} parent=63 // loop_body
                %v1435 = vld [vmem:[%s1433] sm:%s1369]
                %1436 = vst [vmem:[%s1434] sm:%s1369] %v1435
                %s1437 = sadd.s32 1, %s1432
                %p1438 = scmp.ge.s32.totalorder %s1437, %s1420
                %s1439 = scalar_select %p1438, 0, %s1437
                %s1440 = smul.u32 %s1439, 8
                %s1441 = smul.u32 %s1439, 8
                %s1442 = scalar_lea.vmem %s1423, %s1440 [#allocation3]
                %s1443 = scalar_lea.vmem %s1425, %s1441
              $region76: #{discriminator_forward.1} parent=63 // loop_footer
                %s1429 = sadd.s32 %s1427, 1
              $region77: #{discriminator_forward.1} parent=63 // loop_footer_branch
                %1426 = sbr.rel target = $region73
              $region78: #{discriminator_forward.1} parent=63 // loop_exit
                _
            $region64: #{discriminator_forward.1} parent=55 // pred_fallthru
              _
          $region56: #{discriminator_forward.1} parent=51 // pred_fallthru
            _
          %1522 = vnop
        $region52: #{discriminator_forward.1} parent=47 // pred_fallthru
          _
      $region48: #{discriminator_forward.1} parent=5 // pred_fallthru
        _
      %p1523 = scmp.le.s32.totalorder 2, %s14
      // Predicated region
      $region101: #{discriminator_forward.1} parent=5 // pred_check
        %p1524 = pneg %p1523
      $region102: #{discriminator_forward.1} parent=5 // pred_check_branch
        %1526 = sbr.rel (%p1524) target = $region104
      $region103: #{discriminator_forward.1} parent=5 // pred_region
        %s1527 = ssub.s32 %s14, 2
        // Predicated region
        $region105: #{discriminator_forward.1} parent=103 // pred_check
          %p1528 = pneg %p200
        $region106: #{discriminator_forward.1} parent=103 // pred_check_branch
          %1530 = sbr.rel (%p1528) target = $region108
        $region107: #{discriminator_forward.1} parent=103 // pred_region
          %s1531 = sand.u32 %s185, 1
          %s1532 = sand.u32 %s185, 1
          %s1533 = smul.addr %s1532, 128
          %s1534 = scalar_lea.vmem [#allocation3], %s1533
        $region108: #{discriminator_forward.1} parent=103 // pred_fallthru
          _
      $region104: #{discriminator_forward.1} parent=5 // pred_fallthru
        _
    $region6: #{discriminator_forward.1} parent=1 // loop_footer
      %s18 = sadd.s32 1, %s14
    $region7: #{discriminator_forward.1} parent=1 // loop_footer_branch
      %13 = sbr.rel target = $region3
    $region8: #{discriminator_forward.1} parent=1 // loop_exit
      _

</llo_original>
